<compile_context>
chip_gen: v7x
topology: tpu7x:2x2x1
jax: 0.10.0
libtpu: 0.0.40
codegen_flags: <defaults>
</compile_context>

<pallas_src>
import math
import functools

import jax
import jax.numpy as jnp
from jax import lax
from jax.experimental import pallas as pl
from jax.experimental.pallas import tpu as pltpu

# ---- model hyper-parameters (small, consistent with the module) ----
D_MODEL = 32
NHEAD = 4
HEAD_DIM = D_MODEL // NHEAD
DIM_FF = 64
SEQ = 8
BATCH = 2
LN_EPS = 1e-5


def _encoder_layer_kernel(src_ref, pos_ref, wa_ref, wb_ref, vec_ref, out_ref,
                          *, nhead, n_batch):
    """Whole-problem kernel.  Token rows are in (s, n) interleaved order
    (row r -> seq position r // n_batch, batch r % n_batch)."""
    f32 = jnp.float32
    src = src_ref[...].astype(f32)            # (T, D)
    qk_in = src + pos_ref[...].astype(f32)    # q = k = src + pos

    T, D = src.shape
    hd = D // nhead
    FF = wb_ref.shape[0] - 2 * D

    # packed weights: wa = [wqkT ; w1T], wb = [wvT ; woT ; w2T]
    wqkT = wa_ref[0:D, 0:2 * D]               # (D, 2D)
    w1T = wa_ref[D:2 * D, 0:FF]               # (D, FF)
    wvT = wb_ref[0:D, :]                      # (D, D)
    woT = wb_ref[D:2 * D, :]                  # (D, D)
    w2T = wb_ref[2 * D:2 * D + FF, :]         # (FF, D)

    # packed vectors (one row each, lane offset 0)
    bqk = vec_ref[0:1, 0:2 * D]
    bv = vec_ref[1:2, 0:D]
    bo = vec_ref[2:3, 0:D]
    b1 = vec_ref[3:4, 0:FF]
    b2 = vec_ref[4:5, 0:D]
    g1 = vec_ref[5:6, 0:D]
    be1 = vec_ref[6:7, 0:D]
    g2 = vec_ref[7:8, 0:D]
    be2 = vec_ref[8:9, 0:D]

    # fused Q|K projection and V projection (all batches at once)
    QK = jnp.dot(qk_in, wqkT, preferred_element_type=f32) + bqk   # (T, 2D)
    V = jnp.dot(src, wvT, preferred_element_type=f32) + bv        # (T, D)

    # block-diagonal batch mask: token r belongs to batch r % n_batch
    ri = lax.broadcasted_iota(jnp.int32, (T, T), 0) % n_batch
    ci = lax.broadcasted_iota(jnp.int32, (T, T), 1) % n_batch
    neg = jnp.where(ri == ci, f32(0.0), f32(-1e30))               # (T, T)

    inv_sqrt_hd = f32(1.0 / math.sqrt(hd))
    trans_b = (((1,), (1,)), ((), ()))   # contract last dims: Q @ K^T
    attn = None
    for h in range(nhead):               # static loop; heads folded into Wo
        lo, hi = h * hd, (h + 1) * hd
        qh = QK[:, lo:hi]                # (T, hd)
        kh = QK[:, D + lo:D + hi]        # (T, hd)
        vh = V[:, lo:hi]                 # (T, hd)
        s = lax.dot_general(qh, kh, trans_b,
                            preferred_element_type=f32) * inv_sqrt_hd + neg
        s = s - jnp.max(s, axis=-1, keepdims=True)
        p = jnp.exp(s)
        p = p * pl.reciprocal(jnp.sum(p, axis=-1, keepdims=True), approx=True)
        ctx = jnp.dot(p, vh, preferred_element_type=f32)           # (T, hd)
        part = jnp.dot(ctx, woT[lo:hi, :], preferred_element_type=f32)
        attn = part if attn is None else attn + part
    attn = attn + bo

    # residual + LayerNorm 1
    x = src + attn
    mu = jnp.mean(x, axis=-1, keepdims=True)
    var = jnp.mean((x - mu) ** 2, axis=-1, keepdims=True)
    x = (x - mu) * lax.rsqrt(var + LN_EPS) * g1 + be1

    # feed-forward (relu), dropout = identity
    h1 = jnp.maximum(jnp.dot(x, w1T, preferred_element_type=f32) + b1, 0.0)
    ff = jnp.dot(h1, w2T, preferred_element_type=f32) + b2

    # residual + LayerNorm 2
    y = x + ff
    mu2 = jnp.mean(y, axis=-1, keepdims=True)
    var2 = jnp.mean((y - mu2) ** 2, axis=-1, keepdims=True)
    y = (y - mu2) * lax.rsqrt(var2 + LN_EPS) * g2 + be2

    out_ref[...] = y.astype(out_ref.dtype)


def _full_spec(shape):
    zeros = (0,) * len(shape)
    return pl.BlockSpec(shape, lambda i, _z=zeros: _z)


@jax.jit
def transformer_encoder_layer(src, pos, wa, wb, vecs):
    """src, pos: (S, N, d_model) float32 (seq-first).  Returns (S, N, d_model)."""
    S, N, D = src.shape
    T = S * N
    # Free row-major reshapes (no transpose, no extra HBM traffic):
    src_flat = src.reshape(T, D)     # row r -> (s = r // N, n = r % N)
    pos_flat = pos.reshape(T, D)

    kernel = functools.partial(_encoder_layer_kernel, nhead=NHEAD, n_batch=N)
    out_flat = pl.pallas_call(
        kernel,
        out_shape=jax.ShapeDtypeStruct((T, D), src.dtype),
        grid=(1,),                   # single step: whole problem in one shot
        in_specs=[_full_spec((T, D)), _full_spec((T, D)),
                  _full_spec(wa.shape), _full_spec(wb.shape),
                  _full_spec(vecs.shape)],
        out_specs=_full_spec((T, D)),
        compiler_params=pltpu.CompilerParams(
            dimension_semantics=("arbitrary",)),
    )(src_flat, pos_flat, wa, wb, vecs)

    return out_flat.reshape(S, N, D)


def make_params(key):
    """Deterministic synthetic parameters, shapes matching the torch module."""
    ks = jax.random.split(key, 8)
    scale = 0.1
    in_w = scale * jax.random.normal(ks[0], (3 * D_MODEL, D_MODEL), jnp.float32)
    in_b = scale * jax.random.normal(ks[1], (3 * D_MODEL,), jnp.float32)
    wo = scale * jax.random.normal(ks[2], (D_MODEL, D_MODEL), jnp.float32)
    bo = scale * jax.random.normal(ks[3], (D_MODEL,), jnp.float32)
    w1 = scale * jax.random.normal(ks[4], (DIM_FF, D_MODEL), jnp.float32)
    b1 = scale * jax.random.normal(ks[5], (DIM_FF,), jnp.float32)
    w2 = scale * jax.random.normal(ks[6], (D_MODEL, DIM_FF), jnp.float32)
    b2 = scale * jax.random.normal(ks[7], (D_MODEL,), jnp.float32)
    return dict(
        wq=in_w[:D_MODEL], wk=in_w[D_MODEL:2 * D_MODEL], wv=in_w[2 * D_MODEL:],
        bq=in_b[:D_MODEL], bk=in_b[D_MODEL:2 * D_MODEL], bv=in_b[2 * D_MODEL:],
        wo=wo, bo=bo, w1=w1, b1=b1, w2=w2, b2=b2,
        g1=jnp.ones((D_MODEL,), jnp.float32),
        be1=jnp.zeros((D_MODEL,), jnp.float32),
        g2=jnp.ones((D_MODEL,), jnp.float32),
        be2=jnp.zeros((D_MODEL,), jnp.float32))


def pack_params(p):
    """One-time packing of 16 tensors into 3 kernel inputs."""
    D, FF = D_MODEL, DIM_FF
    lw = max(2 * D, FF)
    wa = jnp.zeros((2 * D, lw), jnp.float32)
    wa = wa.at[0:D, 0:2 * D].set(jnp.concatenate([p["wq"].T, p["wk"].T], axis=1))
    wa = wa.at[D:2 * D, 0:FF].set(p["w1"].T)
    wb = jnp.concatenate([p["wv"].T, p["wo"].T, p["w2"].T], axis=0)   # (2D+FF, D)
    vecs = jnp.zeros((9, lw), jnp.float32)
    vecs = vecs.at[0, 0:2 * D].set(jnp.concatenate([p["bq"], p["bk"]]))
    vecs = vecs.at[1, 0:D].set(p["bv"])
    vecs = vecs.at[2, 0:D].set(p["bo"])
    vecs = vecs.at[3, 0:FF].set(p["b1"])
    vecs = vecs.at[4, 0:D].set(p["b2"])
    vecs = vecs.at[5, 0:D].set(p["g1"])
    vecs = vecs.at[6, 0:D].set(p["be1"])
    vecs = vecs.at[7, 0:D].set(p["g2"])
    vecs = vecs.at[8, 0:D].set(p["be2"])
    return wa, wb, vecs


def reference_forward(src, pos, p):
    """Plain-JAX reference replicating torch forward_post (eval mode)."""
    S, N, d = src.shape
    qk = src + pos
    Q = qk @ p["wq"].T + p["bq"]
    K = qk @ p["wk"].T + p["bk"]
    V = src @ p["wv"].T + p["bv"]

    def split_heads(x):   # (S, N, d) -> (N, H, S, hd)
        return x.reshape(S, N, NHEAD, HEAD_DIM).transpose(1, 2, 0, 3)

    Qh, Kh, Vh = split_heads(Q), split_heads(K), split_heads(V)
    scores = jnp.einsum("nhqd,nhkd->nhqk", Qh, Kh) / math.sqrt(HEAD_DIM)
    pattn = jax.nn.softmax(scores, axis=-1)
    O = jnp.einsum("nhqk,nhkd->nhqd", pattn, Vh)
    O = O.transpose(2, 0, 1, 3).reshape(S, N, d)
    attn = O @ p["wo"].T + p["bo"]

    def ln(x, g, b):
        mu = x.mean(-1, keepdims=True)
        var = ((x - mu) ** 2).mean(-1, keepdims=True)
        return (x - mu) / jnp.sqrt(var + LN_EPS) * g + b

    x = ln(src + attn, p["g1"], p["be1"])
    ff = jnp.maximum(x @ p["w1"].T + p["b1"], 0.0) @ p["w2"].T + p["b2"]
    return ln(x + ff, p["g2"], p["be2"])


if __name__ == "__main__":
    key = jax.random.PRNGKey(0)
    k_src, k_pos, k_par = jax.random.split(key, 3)
    src = jax.random.normal(k_src, (SEQ, BATCH, D_MODEL), jnp.float32)
    pos = jax.random.normal(k_pos, (SEQ, BATCH, D_MODEL), jnp.float32)
    raw_params = make_params(k_par)
    wa, wb, vecs = pack_params(raw_params)

    out = transformer_encoder_layer(src, pos, wa, wb, vecs)
    out = jax.block_until_ready(out)

    ref = reference_forward(src, pos, raw_params)
    assert out.shape == (SEQ, BATCH, D_MODEL)
    max_err = float(jnp.max(jnp.abs(out - ref)))
    # tolerance covers pl.reciprocal(approx=True) in the softmax denominator
    assert max_err < 2e-3, max_err
    print("KERNEL_OK")
</pallas_src>

<mosaic_0001>
module attributes {stable_mosaic.version = 11 : i64} {
  func.func @_encoder_layer_kernel(%arg0: i32, %arg1: memref<16x32xf32, #tpu.memory_space<vmem>>, %arg2: memref<16x32xf32, #tpu.memory_space<vmem>>, %arg3: memref<64x64xf32, #tpu.memory_space<vmem>>, %arg4: memref<128x32xf32, #tpu.memory_space<vmem>>, %arg5: memref<9x64xf32, #tpu.memory_space<vmem>>, %arg6: memref<16x32xf32, #tpu.memory_space<vmem>>) attributes {dimension_semantics = [#tpu.dimension_semantics<arbitrary>], iteration_bounds = array<i64: 1>, scalar_prefetch = 0 : i64, scratch_operands = 0 : i64, tpu.core_type = #tpu.core_type<tc>, window_params = [{pipeline_mode = #tpu.pipeline_mode<synchronous>, transform_indices = @transform_0, window_bounds = array<i64: 16, 32>}, {pipeline_mode = #tpu.pipeline_mode<synchronous>, transform_indices = @transform_1, window_bounds = array<i64: 16, 32>}, {pipeline_mode = #tpu.pipeline_mode<synchronous>, transform_indices = @transform_2, window_bounds = array<i64: 64, 64>}, {pipeline_mode = #tpu.pipeline_mode<synchronous>, transform_indices = @transform_3, window_bounds = array<i64: 128, 32>}, {pipeline_mode = #tpu.pipeline_mode<synchronous>, transform_indices = @transform_4, window_bounds = array<i64: 9, 64>}, {pipeline_mode = #tpu.pipeline_mode<synchronous>, transform_indices = @transform_5, window_bounds = array<i64: 16, 32>}]} {
    %c0 = arith.constant 0 : index
    %c0_0 = arith.constant 0 : index
    %0 = vector.load %arg1[%c0, %c0_0] : memref<16x32xf32, #tpu.memory_space<vmem>>, vector<16x32xf32>
    %c0_1 = arith.constant 0 : index
    %c0_2 = arith.constant 0 : index
    %1 = vector.load %arg2[%c0_1, %c0_2] : memref<16x32xf32, #tpu.memory_space<vmem>>, vector<16x32xf32>
    %2 = arith.addf %0, %1 : vector<16x32xf32>
    %c0_3 = arith.constant 0 : index
    %c0_4 = arith.constant 0 : index
    %3 = vector.load %arg3[%c0_3, %c0_4] : memref<64x64xf32, #tpu.memory_space<vmem>>, vector<32x64xf32>
    %c32 = arith.constant 32 : index
    %c0_5 = arith.constant 0 : index
    %4 = vector.load %arg3[%c32, %c0_5] : memref<64x64xf32, #tpu.memory_space<vmem>>, vector<32x64xf32>
    %c0_6 = arith.constant 0 : index
    %c0_7 = arith.constant 0 : index
    %5 = vector.load %arg4[%c0_6, %c0_7] : memref<128x32xf32, #tpu.memory_space<vmem>>, vector<32x32xf32>
    %c32_8 = arith.constant 32 : index
    %c0_9 = arith.constant 0 : index
    %6 = vector.load %arg4[%c32_8, %c0_9] : memref<128x32xf32, #tpu.memory_space<vmem>>, vector<32x32xf32>
    %c64 = arith.constant 64 : index
    %c0_10 = arith.constant 0 : index
    %7 = vector.load %arg4[%c64, %c0_10] : memref<128x32xf32, #tpu.memory_space<vmem>>, vector<64x32xf32>
    %c0_11 = arith.constant 0 : index
    %c0_12 = arith.constant 0 : index
    %8 = vector.load %arg5[%c0_11, %c0_12] : memref<9x64xf32, #tpu.memory_space<vmem>>, vector<1x64xf32>
    %c1 = arith.constant 1 : index
    %c0_13 = arith.constant 0 : index
    %9 = vector.load %arg5[%c1, %c0_13] : memref<9x64xf32, #tpu.memory_space<vmem>>, vector<1x32xf32>
    %c2 = arith.constant 2 : index
    %c0_14 = arith.constant 0 : index
    %10 = vector.load %arg5[%c2, %c0_14] : memref<9x64xf32, #tpu.memory_space<vmem>>, vector<1x32xf32>
    %c3 = arith.constant 3 : index
    %c0_15 = arith.constant 0 : index
    %11 = vector.load %arg5[%c3, %c0_15] : memref<9x64xf32, #tpu.memory_space<vmem>>, vector<1x64xf32>
    %c4 = arith.constant 4 : index
    %c0_16 = arith.constant 0 : index
    %12 = vector.load %arg5[%c4, %c0_16] : memref<9x64xf32, #tpu.memory_space<vmem>>, vector<1x32xf32>
    %c5 = arith.constant 5 : index
    %c0_17 = arith.constant 0 : index
    %13 = vector.load %arg5[%c5, %c0_17] : memref<9x64xf32, #tpu.memory_space<vmem>>, vector<1x32xf32>
    %c6 = arith.constant 6 : index
    %c0_18 = arith.constant 0 : index
    %14 = vector.load %arg5[%c6, %c0_18] : memref<9x64xf32, #tpu.memory_space<vmem>>, vector<1x32xf32>
    %c7 = arith.constant 7 : index
    %c0_19 = arith.constant 0 : index
    %15 = vector.load %arg5[%c7, %c0_19] : memref<9x64xf32, #tpu.memory_space<vmem>>, vector<1x32xf32>
    %c8 = arith.constant 8 : index
    %c0_20 = arith.constant 0 : index
    %16 = vector.load %arg5[%c8, %c0_20] : memref<9x64xf32, #tpu.memory_space<vmem>>, vector<1x32xf32>
    %cst = arith.constant dense<0.000000e+00> : vector<16x64xf32>
    %17 = tpu.matmul %2, %3, %cst {dimension_numbers = #tpu.dot_dimension_numbers<[1], [0], [0], [1], [0, 0, 1, 1], [], []>} : vector<16x32xf32>, vector<32x64xf32>, vector<16x64xf32> -> vector<16x64xf32>
    %18 = vector.broadcast %8 : vector<1x64xf32> to vector<16x64xf32>
    %19 = arith.addf %17, %18 : vector<16x64xf32>
    %cst_21 = arith.constant dense<0.000000e+00> : vector<16x32xf32>
    %20 = tpu.matmul %0, %5, %cst_21 {dimension_numbers = #tpu.dot_dimension_numbers<[1], [0], [0], [1], [0, 0, 1, 1], [], []>} : vector<16x32xf32>, vector<32x32xf32>, vector<16x32xf32> -> vector<16x32xf32>
    %21 = vector.broadcast %9 : vector<1x32xf32> to vector<16x32xf32>
    %22 = arith.addf %20, %21 : vector<16x32xf32>
    %23 = tpu.iota {dimensions = array<i32: 0>} : vector<16x16xi32>
    %c2_i32 = arith.constant 2 : i32
    %c0_i32 = arith.constant 0 : i32
    %24 = arith.cmpi eq, %c2_i32, %c0_i32 : i32
    %c1_i32 = arith.constant 1 : i32
    %25 = arith.select %24, %c1_i32, %c2_i32 : i32
    %26 = vector.broadcast %25 : i32 to vector<16x16xi32>
    %27 = arith.remsi %23, %26 : vector<16x16xi32>
    %c0_i32_22 = arith.constant 0 : i32
    %28 = vector.broadcast %c0_i32_22 : i32 to vector<16x16xi32>
    %29 = arith.cmpi ne, %27, %28 : vector<16x16xi32>
    %c0_i32_23 = arith.constant 0 : i32
    %30 = vector.broadcast %c0_i32_23 : i32 to vector<16x16xi32>
    %31 = arith.cmpi slt, %27, %30 : vector<16x16xi32>
    %c0_i32_24 = arith.constant 0 : i32
    %32 = arith.cmpi slt, %25, %c0_i32_24 : i32
    %33 = vector.broadcast %32 : i1 to vector<16x16xi1>
    %34 = vector.broadcast %33 : vector<16x16xi1> to vector<16x16xi1>
    %35 = arith.xori %31, %34 : vector<16x16xi1>
    %36 = arith.andi %35, %29 : vector<16x16xi1>
    %37 = vector.broadcast %25 : i32 to vector<16x16xi32>
    %38 = arith.addi %27, %37 : vector<16x16xi32>
    %39 = arith.select %36, %38, %27 : vector<16x16xi1>, vector<16x16xi32>
    %40 = tpu.iota {dimensions = array<i32: 1>} : vector<16x16xi32>
    %c2_i32_25 = arith.constant 2 : i32
    %c0_i32_26 = arith.constant 0 : i32
    %41 = arith.cmpi eq, %c2_i32_25, %c0_i32_26 : i32
    %c1_i32_27 = arith.constant 1 : i32
    %42 = arith.select %41, %c1_i32_27, %c2_i32_25 : i32
    %43 = vector.broadcast %42 : i32 to vector<16x16xi32>
    %44 = arith.remsi %40, %43 : vector<16x16xi32>
    %c0_i32_28 = arith.constant 0 : i32
    %45 = vector.broadcast %c0_i32_28 : i32 to vector<16x16xi32>
    %46 = arith.cmpi ne, %44, %45 : vector<16x16xi32>
    %c0_i32_29 = arith.constant 0 : i32
    %47 = vector.broadcast %c0_i32_29 : i32 to vector<16x16xi32>
    %48 = arith.cmpi slt, %44, %47 : vector<16x16xi32>
    %c0_i32_30 = arith.constant 0 : i32
    %49 = arith.cmpi slt, %42, %c0_i32_30 : i32
    %50 = vector.broadcast %49 : i1 to vector<16x16xi1>
    %51 = vector.broadcast %50 : vector<16x16xi1> to vector<16x16xi1>
    %52 = arith.xori %48, %51 : vector<16x16xi1>
    %53 = arith.andi %52, %46 : vector<16x16xi1>
    %54 = vector.broadcast %42 : i32 to vector<16x16xi32>
    %55 = arith.addi %44, %54 : vector<16x16xi32>
    %56 = arith.select %53, %55, %44 : vector<16x16xi1>, vector<16x16xi32>
    %57 = arith.cmpi eq, %39, %56 : vector<16x16xi32>
    %cst_31 = arith.constant 0.000000e+00 : f32
    %cst_32 = arith.constant -1.000000e+30 : f32
    %58 = vector.broadcast %cst_31 : f32 to vector<16x16xf32>
    %59 = vector.broadcast %cst_32 : f32 to vector<16x16xf32>
    %60 = arith.select %57, %58, %59 : vector<16x16xi1>, vector<16x16xf32>
    %61 = vector.extract_strided_slice %19 {offsets = [0, 0], sizes = [16, 8], strides = [1, 1]} : vector<16x64xf32> to vector<16x8xf32>
    %62 = vector.extract_strided_slice %19 {offsets = [0, 32], sizes = [16, 8], strides = [1, 1]} : vector<16x64xf32> to vector<16x8xf32>
    %63 = vector.extract_strided_slice %22 {offsets = [0, 0], sizes = [16, 8], strides = [1, 1]} : vector<16x32xf32> to vector<16x8xf32>
    %cst_33 = arith.constant dense<0.000000e+00> : vector<16x16xf32>
    %64 = tpu.matmul %61, %62, %cst_33 {dimension_numbers = #tpu.dot_dimension_numbers<[1], [1], [0], [0], [0, 0, 1, 0], [], []>} : vector<16x8xf32>, vector<16x8xf32>, vector<16x16xf32> -> vector<16x16xf32>
    %cst_34 = arith.constant 0.353553385 : f32
    %65 = vector.broadcast %cst_34 : f32 to vector<16x16xf32>
    %66 = arith.mulf %64, %65 : vector<16x16xf32>
    %67 = arith.addf %66, %60 : vector<16x16xf32>
    %cst_35 = arith.constant dense<0xFF800000> : vector<16xf32>
    %68 = vector.multi_reduction <maximumf>, %67, %cst_35 [1] : vector<16x16xf32> to vector<16xf32>
    %69 = vector.shape_cast %68 : vector<16xf32> to vector<16x1xf32>
    %70 = vector.broadcast %69 : vector<16x1xf32> to vector<16x16xf32>
    %71 = arith.subf %67, %70 : vector<16x16xf32>
    %72 = math.exp %71 : vector<16x16xf32>
    %cst_36 = arith.constant dense<0.000000e+00> : vector<16xf32>
    %73 = vector.multi_reduction <add>, %72, %cst_36 [1] : vector<16x16xf32> to vector<16xf32>
    %74 = vector.shape_cast %73 : vector<16xf32> to vector<16x1xf32>
    %75 = tpu.reciprocal %74 {approx = true} : vector<16x1xf32> -> vector<16x1xf32>
    %76 = vector.broadcast %75 : vector<16x1xf32> to vector<16x16xf32>
    %77 = arith.mulf %72, %76 : vector<16x16xf32>
    %cst_37 = arith.constant dense<0.000000e+00> : vector<16x8xf32>
    %78 = tpu.matmul %77, %63, %cst_37 {dimension_numbers = #tpu.dot_dimension_numbers<[1], [0], [0], [1], [0, 0, 1, 1], [], []>} : vector<16x16xf32>, vector<16x8xf32>, vector<16x8xf32> -> vector<16x8xf32>
    %79 = vector.extract_strided_slice %6 {offsets = [0, 0], sizes = [8, 32], strides = [1, 1]} : vector<32x32xf32> to vector<8x32xf32>
    %cst_38 = arith.constant dense<0.000000e+00> : vector<16x32xf32>
    %80 = tpu.matmul %78, %79, %cst_38 {dimension_numbers = #tpu.dot_dimension_numbers<[1], [0], [0], [1], [0, 0, 1, 1], [], []>} : vector<16x8xf32>, vector<8x32xf32>, vector<16x32xf32> -> vector<16x32xf32>
    %81 = vector.extract_strided_slice %19 {offsets = [0, 8], sizes = [16, 8], strides = [1, 1]} : vector<16x64xf32> to vector<16x8xf32>
    %82 = vector.extract_strided_slice %19 {offsets = [0, 40], sizes = [16, 8], strides = [1, 1]} : vector<16x64xf32> to vector<16x8xf32>
    %83 = vector.extract_strided_slice %22 {offsets = [0, 8], sizes = [16, 8], strides = [1, 1]} : vector<16x32xf32> to vector<16x8xf32>
    %cst_39 = arith.constant dense<0.000000e+00> : vector<16x16xf32>
    %84 = tpu.matmul %81, %82, %cst_39 {dimension_numbers = #tpu.dot_dimension_numbers<[1], [1], [0], [0], [0, 0, 1, 0], [], []>} : vector<16x8xf32>, vector<16x8xf32>, vector<16x16xf32> -> vector<16x16xf32>
    %cst_40 = arith.constant 0.353553385 : f32
    %85 = vector.broadcast %cst_40 : f32 to vector<16x16xf32>
    %86 = arith.mulf %84, %85 : vector<16x16xf32>
    %87 = arith.addf %86, %60 : vector<16x16xf32>
    %cst_41 = arith.constant dense<0xFF800000> : vector<16xf32>
    %88 = vector.multi_reduction <maximumf>, %87, %cst_41 [1] : vector<16x16xf32> to vector<16xf32>
    %89 = vector.shape_cast %88 : vector<16xf32> to vector<16x1xf32>
    %90 = vector.broadcast %89 : vector<16x1xf32> to vector<16x16xf32>
    %91 = arith.subf %87, %90 : vector<16x16xf32>
    %92 = math.exp %91 : vector<16x16xf32>
    %cst_42 = arith.constant dense<0.000000e+00> : vector<16xf32>
    %93 = vector.multi_reduction <add>, %92, %cst_42 [1] : vector<16x16xf32> to vector<16xf32>
    %94 = vector.shape_cast %93 : vector<16xf32> to vector<16x1xf32>
    %95 = tpu.reciprocal %94 {approx = true} : vector<16x1xf32> -> vector<16x1xf32>
    %96 = vector.broadcast %95 : vector<16x1xf32> to vector<16x16xf32>
    %97 = arith.mulf %92, %96 : vector<16x16xf32>
    %cst_43 = arith.constant dense<0.000000e+00> : vector<16x8xf32>
    %98 = tpu.matmul %97, %83, %cst_43 {dimension_numbers = #tpu.dot_dimension_numbers<[1], [0], [0], [1], [0, 0, 1, 1], [], []>} : vector<16x16xf32>, vector<16x8xf32>, vector<16x8xf32> -> vector<16x8xf32>
    %99 = vector.extract_strided_slice %6 {offsets = [8, 0], sizes = [8, 32], strides = [1, 1]} : vector<32x32xf32> to vector<8x32xf32>
    %cst_44 = arith.constant dense<0.000000e+00> : vector<16x32xf32>
    %100 = tpu.matmul %98, %99, %cst_44 {dimension_numbers = #tpu.dot_dimension_numbers<[1], [0], [0], [1], [0, 0, 1, 1], [], []>} : vector<16x8xf32>, vector<8x32xf32>, vector<16x32xf32> -> vector<16x32xf32>
    %101 = arith.addf %80, %100 : vector<16x32xf32>
    %102 = vector.extract_strided_slice %19 {offsets = [0, 16], sizes = [16, 8], strides = [1, 1]} : vector<16x64xf32> to vector<16x8xf32>
    %103 = vector.extract_strided_slice %19 {offsets = [0, 48], sizes = [16, 8], strides = [1, 1]} : vector<16x64xf32> to vector<16x8xf32>
    %104 = vector.extract_strided_slice %22 {offsets = [0, 16], sizes = [16, 8], strides = [1, 1]} : vector<16x32xf32> to vector<16x8xf32>
    %cst_45 = arith.constant dense<0.000000e+00> : vector<16x16xf32>
    %105 = tpu.matmul %102, %103, %cst_45 {dimension_numbers = #tpu.dot_dimension_numbers<[1], [1], [0], [0], [0, 0, 1, 0], [], []>} : vector<16x8xf32>, vector<16x8xf32>, vector<16x16xf32> -> vector<16x16xf32>
    %cst_46 = arith.constant 0.353553385 : f32
    %106 = vector.broadcast %cst_46 : f32 to vector<16x16xf32>
    %107 = arith.mulf %105, %106 : vector<16x16xf32>
    %108 = arith.addf %107, %60 : vector<16x16xf32>
    %cst_47 = arith.constant dense<0xFF800000> : vector<16xf32>
    %109 = vector.multi_reduction <maximumf>, %108, %cst_47 [1] : vector<16x16xf32> to vector<16xf32>
    %110 = vector.shape_cast %109 : vector<16xf32> to vector<16x1xf32>
    %111 = vector.broadcast %110 : vector<16x1xf32> to vector<16x16xf32>
    %112 = arith.subf %108, %111 : vector<16x16xf32>
    %113 = math.exp %112 : vector<16x16xf32>
    %cst_48 = arith.constant dense<0.000000e+00> : vector<16xf32>
    %114 = vector.multi_reduction <add>, %113, %cst_48 [1] : vector<16x16xf32> to vector<16xf32>
    %115 = vector.shape_cast %114 : vector<16xf32> to vector<16x1xf32>
    %116 = tpu.reciprocal %115 {approx = true} : vector<16x1xf32> -> vector<16x1xf32>
    %117 = vector.broadcast %116 : vector<16x1xf32> to vector<16x16xf32>
    %118 = arith.mulf %113, %117 : vector<16x16xf32>
    %cst_49 = arith.constant dense<0.000000e+00> : vector<16x8xf32>
    %119 = tpu.matmul %118, %104, %cst_49 {dimension_numbers = #tpu.dot_dimension_numbers<[1], [0], [0], [1], [0, 0, 1, 1], [], []>} : vector<16x16xf32>, vector<16x8xf32>, vector<16x8xf32> -> vector<16x8xf32>
    %120 = vector.extract_strided_slice %6 {offsets = [16, 0], sizes = [8, 32], strides = [1, 1]} : vector<32x32xf32> to vector<8x32xf32>
    %cst_50 = arith.constant dense<0.000000e+00> : vector<16x32xf32>
    %121 = tpu.matmul %119, %120, %cst_50 {dimension_numbers = #tpu.dot_dimension_numbers<[1], [0], [0], [1], [0, 0, 1, 1], [], []>} : vector<16x8xf32>, vector<8x32xf32>, vector<16x32xf32> -> vector<16x32xf32>
    %122 = arith.addf %101, %121 : vector<16x32xf32>
    %123 = vector.extract_strided_slice %19 {offsets = [0, 24], sizes = [16, 8], strides = [1, 1]} : vector<16x64xf32> to vector<16x8xf32>
    %124 = vector.extract_strided_slice %19 {offsets = [0, 56], sizes = [16, 8], strides = [1, 1]} : vector<16x64xf32> to vector<16x8xf32>
    %125 = vector.extract_strided_slice %22 {offsets = [0, 24], sizes = [16, 8], strides = [1, 1]} : vector<16x32xf32> to vector<16x8xf32>
    %cst_51 = arith.constant dense<0.000000e+00> : vector<16x16xf32>
    %126 = tpu.matmul %123, %124, %cst_51 {dimension_numbers = #tpu.dot_dimension_numbers<[1], [1], [0], [0], [0, 0, 1, 0], [], []>} : vector<16x8xf32>, vector<16x8xf32>, vector<16x16xf32> -> vector<16x16xf32>
    %cst_52 = arith.constant 0.353553385 : f32
    %127 = vector.broadcast %cst_52 : f32 to vector<16x16xf32>
    %128 = arith.mulf %126, %127 : vector<16x16xf32>
    %129 = arith.addf %128, %60 : vector<16x16xf32>
    %cst_53 = arith.constant dense<0xFF800000> : vector<16xf32>
    %130 = vector.multi_reduction <maximumf>, %129, %cst_53 [1] : vector<16x16xf32> to vector<16xf32>
    %131 = vector.shape_cast %130 : vector<16xf32> to vector<16x1xf32>
    %132 = vector.broadcast %131 : vector<16x1xf32> to vector<16x16xf32>
    %133 = arith.subf %129, %132 : vector<16x16xf32>
    %134 = math.exp %133 : vector<16x16xf32>
    %cst_54 = arith.constant dense<0.000000e+00> : vector<16xf32>
    %135 = vector.multi_reduction <add>, %134, %cst_54 [1] : vector<16x16xf32> to vector<16xf32>
    %136 = vector.shape_cast %135 : vector<16xf32> to vector<16x1xf32>
    %137 = tpu.reciprocal %136 {approx = true} : vector<16x1xf32> -> vector<16x1xf32>
    %138 = vector.broadcast %137 : vector<16x1xf32> to vector<16x16xf32>
    %139 = arith.mulf %134, %138 : vector<16x16xf32>
    %cst_55 = arith.constant dense<0.000000e+00> : vector<16x8xf32>
    %140 = tpu.matmul %139, %125, %cst_55 {dimension_numbers = #tpu.dot_dimension_numbers<[1], [0], [0], [1], [0, 0, 1, 1], [], []>} : vector<16x16xf32>, vector<16x8xf32>, vector<16x8xf32> -> vector<16x8xf32>
    %141 = vector.extract_strided_slice %6 {offsets = [24, 0], sizes = [8, 32], strides = [1, 1]} : vector<32x32xf32> to vector<8x32xf32>
    %cst_56 = arith.constant dense<0.000000e+00> : vector<16x32xf32>
    %142 = tpu.matmul %140, %141, %cst_56 {dimension_numbers = #tpu.dot_dimension_numbers<[1], [0], [0], [1], [0, 0, 1, 1], [], []>} : vector<16x8xf32>, vector<8x32xf32>, vector<16x32xf32> -> vector<16x32xf32>
    %143 = arith.addf %122, %142 : vector<16x32xf32>
    %144 = vector.broadcast %10 : vector<1x32xf32> to vector<16x32xf32>
    %145 = arith.addf %143, %144 : vector<16x32xf32>
    %146 = arith.addf %0, %145 : vector<16x32xf32>
    %cst_57 = arith.constant dense<0.000000e+00> : vector<16xf32>
    %147 = vector.multi_reduction <add>, %146, %cst_57 [1] : vector<16x32xf32> to vector<16xf32>
    %148 = vector.shape_cast %147 : vector<16xf32> to vector<16x1xf32>
    %cst_58 = arith.constant 3.200000e+01 : f32
    %149 = vector.broadcast %cst_58 : f32 to vector<16x1xf32>
    %150 = arith.divf %148, %149 : vector<16x1xf32>
    %151 = vector.broadcast %150 : vector<16x1xf32> to vector<16x32xf32>
    %152 = arith.subf %146, %151 : vector<16x32xf32>
    %153 = arith.mulf %152, %152 : vector<16x32xf32>
    %cst_59 = arith.constant dense<0.000000e+00> : vector<16xf32>
    %154 = vector.multi_reduction <add>, %153, %cst_59 [1] : vector<16x32xf32> to vector<16xf32>
    %155 = vector.shape_cast %154 : vector<16xf32> to vector<16x1xf32>
    %cst_60 = arith.constant 3.200000e+01 : f32
    %156 = vector.broadcast %cst_60 : f32 to vector<16x1xf32>
    %157 = arith.divf %155, %156 : vector<16x1xf32>
    %158 = vector.broadcast %150 : vector<16x1xf32> to vector<16x32xf32>
    %159 = arith.subf %146, %158 : vector<16x32xf32>
    %cst_61 = arith.constant 9.99999974E-6 : f32
    %160 = vector.broadcast %cst_61 : f32 to vector<16x1xf32>
    %161 = arith.addf %157, %160 : vector<16x1xf32>
    %162 = math.rsqrt %161 : vector<16x1xf32>
    %163 = vector.broadcast %162 : vector<16x1xf32> to vector<16x32xf32>
    %164 = arith.mulf %159, %163 : vector<16x32xf32>
    %165 = vector.broadcast %13 : vector<1x32xf32> to vector<16x32xf32>
    %166 = arith.mulf %164, %165 : vector<16x32xf32>
    %167 = vector.broadcast %14 : vector<1x32xf32> to vector<16x32xf32>
    %168 = arith.addf %166, %167 : vector<16x32xf32>
    %cst_62 = arith.constant dense<0.000000e+00> : vector<16x64xf32>
    %169 = tpu.matmul %168, %4, %cst_62 {dimension_numbers = #tpu.dot_dimension_numbers<[1], [0], [0], [1], [0, 0, 1, 1], [], []>} : vector<16x32xf32>, vector<32x64xf32>, vector<16x64xf32> -> vector<16x64xf32>
    %170 = vector.broadcast %11 : vector<1x64xf32> to vector<16x64xf32>
    %171 = arith.addf %169, %170 : vector<16x64xf32>
    %cst_63 = arith.constant 0.000000e+00 : f32
    %172 = vector.broadcast %cst_63 : f32 to vector<16x64xf32>
    %173 = arith.maximumf %171, %172 : vector<16x64xf32>
    %cst_64 = arith.constant dense<0.000000e+00> : vector<16x32xf32>
    %174 = tpu.matmul %173, %7, %cst_64 {dimension_numbers = #tpu.dot_dimension_numbers<[1], [0], [0], [1], [0, 0, 1, 1], [], []>} : vector<16x64xf32>, vector<64x32xf32>, vector<16x32xf32> -> vector<16x32xf32>
    %175 = vector.broadcast %12 : vector<1x32xf32> to vector<16x32xf32>
    %176 = arith.addf %174, %175 : vector<16x32xf32>
    %177 = arith.addf %168, %176 : vector<16x32xf32>
    %cst_65 = arith.constant dense<0.000000e+00> : vector<16xf32>
    %178 = vector.multi_reduction <add>, %177, %cst_65 [1] : vector<16x32xf32> to vector<16xf32>
    %179 = vector.shape_cast %178 : vector<16xf32> to vector<16x1xf32>
    %cst_66 = arith.constant 3.200000e+01 : f32
    %180 = vector.broadcast %cst_66 : f32 to vector<16x1xf32>
    %181 = arith.divf %179, %180 : vector<16x1xf32>
    %182 = vector.broadcast %181 : vector<16x1xf32> to vector<16x32xf32>
    %183 = arith.subf %177, %182 : vector<16x32xf32>
    %184 = arith.mulf %183, %183 : vector<16x32xf32>
    %cst_67 = arith.constant dense<0.000000e+00> : vector<16xf32>
    %185 = vector.multi_reduction <add>, %184, %cst_67 [1] : vector<16x32xf32> to vector<16xf32>
    %186 = vector.shape_cast %185 : vector<16xf32> to vector<16x1xf32>
    %cst_68 = arith.constant 3.200000e+01 : f32
    %187 = vector.broadcast %cst_68 : f32 to vector<16x1xf32>
    %188 = arith.divf %186, %187 : vector<16x1xf32>
    %189 = vector.broadcast %181 : vector<16x1xf32> to vector<16x32xf32>
    %190 = arith.subf %177, %189 : vector<16x32xf32>
    %cst_69 = arith.constant 9.99999974E-6 : f32
    %191 = vector.broadcast %cst_69 : f32 to vector<16x1xf32>
    %192 = arith.addf %188, %191 : vector<16x1xf32>
    %193 = math.rsqrt %192 : vector<16x1xf32>
    %194 = vector.broadcast %193 : vector<16x1xf32> to vector<16x32xf32>
    %195 = arith.mulf %190, %194 : vector<16x32xf32>
    %196 = vector.broadcast %15 : vector<1x32xf32> to vector<16x32xf32>
    %197 = arith.mulf %195, %196 : vector<16x32xf32>
    %198 = vector.broadcast %16 : vector<1x32xf32> to vector<16x32xf32>
    %199 = arith.addf %197, %198 : vector<16x32xf32>
    %c0_70 = arith.constant 0 : index
    %c0_71 = arith.constant 0 : index
    %200 = vector.load %arg6[%c0_70, %c0_71] : memref<16x32xf32, #tpu.memory_space<vmem>>, vector<16x32xf32>
    tpu.vector_store %arg6[%c0_70, %c0_71], %199 {strides = array<i32>} : memref<16x32xf32, #tpu.memory_space<vmem>>, vector<16x32xf32>,
    return
  }
  func.func @transform_0(%arg0: i32) -> (i32, i32) {
    %c0_i32 = arith.constant 0 : i32
    %c0_i32_0 = arith.constant 0 : i32
    %c0_i32_1 = arith.constant 0 : i32
    return %c0_i32, %c0_i32_0 : i32, i32
  }
  func.func @transform_1(%arg0: i32) -> (i32, i32) {
    %c0_i32 = arith.constant 0 : i32
    %c0_i32_0 = arith.constant 0 : i32
    %c0_i32_1 = arith.constant 0 : i32
    return %c0_i32, %c0_i32_0 : i32, i32
  }
  func.func @transform_2(%arg0: i32) -> (i32, i32) {
    %c0_i32 = arith.constant 0 : i32
    %c0_i32_0 = arith.constant 0 : i32
    %c0_i32_1 = arith.constant 0 : i32
    return %c0_i32, %c0_i32_0 : i32, i32
  }
  func.func @transform_3(%arg0: i32) -> (i32, i32) {
    %c0_i32 = arith.constant 0 : i32
    %c0_i32_0 = arith.constant 0 : i32
    %c0_i32_1 = arith.constant 0 : i32
    return %c0_i32, %c0_i32_0 : i32, i32
  }
  func.func @transform_4(%arg0: i32) -> (i32, i32) {
    %c0_i32 = arith.constant 0 : i32
    %c0_i32_0 = arith.constant 0 : i32
    %c0_i32_1 = arith.constant 0 : i32
    return %c0_i32, %c0_i32_0 : i32, i32
  }
  func.func @transform_5(%arg0: i32) -> (i32, i32) {
    %c0_i32 = arith.constant 0 : i32
    %c0_i32_0 = arith.constant 0 : i32
    %c0_i32_1 = arith.constant 0 : i32
    return %c0_i32, %c0_i32_0 : i32, i32
  }
}

</mosaic_0001>

<llo_original>
// kernel: transformer_encoder_layer.1
$region0: #{transformer_encoder_layer.1}
  #allocation0 [shape = 'u32[]', space=smem, size = 0x4, offset = 0x4, fixed_abs, tag = 'smem constant byte address 0x4 - core index']
  #allocation1 [shape = 'u32[144,128]{1,0:T(1,128)}', space=vmem, size = 0x12000, scoped, tag = 'internal scratch']
  %s0 = inlined_call_operand.vmem [shape: f32[16,32], index: 0, kind: input, shape index: {}]
  %s1 = inlined_call_operand.vmem [shape: f32[16,32], index: 1, kind: input, shape index: {}]
  %s2 = inlined_call_operand.vmem [shape: f32[64,64], index: 2, kind: input, shape index: {}]
  %s3 = inlined_call_operand.vmem [shape: f32[128,32], index: 3, kind: input, shape index: {}]
  %s4 = inlined_call_operand.vmem [shape: f32[9,64], index: 4, kind: input, shape index: {}]
  %s5 = inlined_call_operand.hbm [shape: f32[16,32], index: 5, kind: output, shape index: {}]
  %s6 = sld [smem:[#allocation0]]
  $region30: #{transformer_encoder_layer.1} parent=0
    _
  %s8 = ssub.s32 1, %s6
  %s9 = scalar_select 0, %s8, %s6
  $region1: #{transformer_encoder_layer.1} parent=0
    #allocation2 [shape = 'u8[8192]{0}', space=vmem, size = 0x2000, scoped, tag = 'output window, operand 0, single buffered']
    #allocation3 [shape = 's32[1]{0}', space=sflag, size = 0x4, scoped, tag = 'scoped memory for transformer_encoder_layer.1']
    %10 = vsyncpa [#allocation3], 0
    // Predicated region
    $region2: #{transformer_encoder_layer.1} parent=1 // pred_check
      _
    $region3: #{transformer_encoder_layer.1} parent=1 // pred_check_branch
      %12 = sbr.rel (0) target = $region5
    $region4: #{transformer_encoder_layer.1} parent=1 // pred_region
      _
    $region5: #{transformer_encoder_layer.1} parent=1 // pred_fallthru
      _
    // Predicated region
    $region6: #{transformer_encoder_layer.1} parent=1 // pred_check
      _
    $region7: #{transformer_encoder_layer.1} parent=1 // pred_check_branch
      %14 = sbr.rel (0) target = $region9
    $region8: #{transformer_encoder_layer.1} parent=1 // pred_region
      _
    $region9: #{transformer_encoder_layer.1} parent=1 // pred_fallthru
      _
    // Predicated region
    $region10: #{transformer_encoder_layer.1} parent=1 // pred_check
      _
    $region11: #{transformer_encoder_layer.1} parent=1 // pred_check_branch
      %16 = sbr.rel (0) target = $region13
    $region12: #{transformer_encoder_layer.1} parent=1 // pred_region
      _
    $region13: #{transformer_encoder_layer.1} parent=1 // pred_fallthru
      _
    // Predicated region
    $region14: #{transformer_encoder_layer.1} parent=1 // pred_check
      _
    $region15: #{transformer_encoder_layer.1} parent=1 // pred_check_branch
      %18 = sbr.rel (0) target = $region17
    $region16: #{transformer_encoder_layer.1} parent=1 // pred_region
      _
    $region17: #{transformer_encoder_layer.1} parent=1 // pred_fallthru
      _
    // Predicated region
    $region18: #{transformer_encoder_layer.1} parent=1 // pred_check
      _
    $region19: #{transformer_encoder_layer.1} parent=1 // pred_check_branch
      %20 = sbr.rel (0) target = $region21
    $region20: #{transformer_encoder_layer.1} parent=1 // pred_region
      _
    $region21: #{transformer_encoder_layer.1} parent=1 // pred_fallthru
      _
    %v21 = vld [vmem:[%s0] sm:$0xff]
    %v22 = vld [vmem:[%s0 + $0x8] sm:$0xff]
    %v23 = vld [vmem:[%s1] sm:$0xff]
    %v24 = vld [vmem:[%s1 + $0x8] sm:$0xff]
    %v25 = vadd.f32 %v21, %v23
    %v26 = vadd.f32 %v22, %v24
    %v27 = vld [vmem:[%s2] sm:$0xff]
    %v28 = vld [vmem:[%s2 + $0x8] sm:$0xff]
    %v29 = vld [vmem:[%s2 + $0x10] sm:$0xff]
    %v30 = vld [vmem:[%s2 + $0x18] sm:$0xff]
    %v31 = vld [vmem:[%s2 + $0x20] sm:$0xff]
    %v32 = vld [vmem:[%s2 + $0x28] sm:$0xff]
    %v33 = vld [vmem:[%s2 + $0x30] sm:$0xff]
    %v34 = vld [vmem:[%s2 + $0x38] sm:$0xff]
    %v35 = vld [vmem:[%s3] sm:$0xff]
    %v36 = vld [vmem:[%s3 + $0x8] sm:$0xff]
    %v37 = vld [vmem:[%s3 + $0x10] sm:$0xff]
    %v38 = vld [vmem:[%s3 + $0x18] sm:$0xff]
    %v39 = vld [vmem:[%s3 + $0x20] sm:$0xff]
    %v40 = vld [vmem:[%s3 + $0x28] sm:$0xff]
    %v41 = vld [vmem:[%s3 + $0x30] sm:$0xff]
    %v42 = vld [vmem:[%s3 + $0x38] sm:$0xff]
    %v43 = vld [vmem:[%s3 + $0x40] sm:$0xff]
    %v44 = vld [vmem:[%s3 + $0x48] sm:$0xff]
    %v45 = vld [vmem:[%s3 + $0x50] sm:$0xff]
    %v46 = vld [vmem:[%s3 + $0x58] sm:$0xff]
    %v47 = vld [vmem:[%s3 + $0x60] sm:$0xff]
    %v48 = vld [vmem:[%s3 + $0x68] sm:$0xff]
    %v49 = vld [vmem:[%s3 + $0x70] sm:$0xff]
    %v50 = vld [vmem:[%s3 + $0x78] sm:$0xff]
    %v51 = vld [vmem:[%s4] sm:$0x1]
    %v52 = vld [vmem:[%s4 + $0x1] sm:$0x1]
    %v53 = vld [vmem:[%s4 + $0x2] sm:$0x1]
    %v54 = vld [vmem:[%s4 + $0x3] sm:$0x1]
    %v55 = vld [vmem:[%s4 + $0x4] sm:$0x1]
    %v56 = vld [vmem:[%s4 + $0x5] sm:$0x1]
    %v57 = vld [vmem:[%s4 + $0x6] sm:$0x1]
    %v58 = vld [vmem:[%s4 + $0x7] sm:$0x1]
    %v59 = vld [vmem:[%s4 + $0x8] sm:$0x1]
    %v60 = vlaneseq
    %v61 = vshrl.u32 %v60, 7
    %v62 = vsub.s32 0, %v61
    %v63 = vrot.slane %v51, %v62
    %vm64 = vcmask 261120
    %v66 = vsel %vm64, %v25, 0
    %v69 = vsel %vm64, %v26, 0
    %71 = vmatprep.subr.mxu0 0.0
    %72 = vmatpush1.msra.mxu0 %v27
    %73 = vmatprep.subr.mxu0 0.0
    %74 = vmatpush1.msra.mxu0 %v28
    %75 = vmatprep.subr.mxu0 0.0
    %76 = vmatpush1.msra.mxu0 %v29
    %77 = vmatprep.subr.mxu0 0.0
    %78 = vmatpush1.msra.mxu0 %v30
    %79 = vmatprep.subr.mxu0 0.0
    %80 = vmatpush1.msra.mxu0 0.0
    %81 = vmatprep.subr.mxu0 0.0
    %82 = vmatpush1.msra.mxu0 0.0
    %83 = vmatprep.subr.mxu0 0.0
    %84 = vmatpush1.msra.mxu0 0.0
    %85 = vmatprep.subr.mxu0 0.0
    %86 = vmatpush1.msra.mxu0 0.0
    %87 = vmatprep.subr.mxu0 0.0
    %88 = vmatpush1.msra.mxu0 0.0
    %89 = vmatprep.subr.mxu0 0.0
    %90 = vmatpush1.msra.mxu0 0.0
    %91 = vmatprep.subr.mxu0 0.0
    %92 = vmatpush1.msra.mxu0 0.0
    %93 = vmatprep.subr.mxu0 0.0
    %94 = vmatpush1.msra.mxu0 0.0
    %95 = vmatprep.subr.mxu0 0.0
    %96 = vmatpush1.msra.mxu0 0.0
    %97 = vmatprep.subr.mxu0 0.0
    %98 = vmatpush1.msra.mxu0 0.0
    %99 = vmatprep.subr.mxu0 0.0
    %100 = vmatpush1.msra.mxu0 0.0
    %101 = vmatprep.subr.mxu0 0.0
    %102 = vmatpush1.msra.mxu0 0.0
    %103 = vmatprep.subr.mxu0 0.0
    %104 = vmatpush1.msra.mxu0 0.0
    %105 = vmatprep.subr.mxu0 0.0
    %106 = vmatpush1.msra.mxu0 0.0
    %107 = vmatprep.subr.mxu0 0.0
    %108 = vmatpush1.msra.mxu0 0.0
    %109 = vmatprep.subr.mxu0 0.0
    %110 = vmatpush1.msra.mxu0 0.0
    %111 = vmatprep.subr.mxu0 0.0
    %112 = vmatpush1.msra.mxu0 0.0
    %113 = vmatprep.subr.mxu0 0.0
    %114 = vmatpush1.msra.mxu0 0.0
    %115 = vmatprep.subr.mxu0 0.0
    %116 = vmatpush1.msra.mxu0 0.0
    %117 = vmatprep.subr.mxu0 0.0
    %118 = vmatpush1.msra.mxu0 0.0
    %119 = vmatprep.subr.mxu0 0.0
    %120 = vmatpush1.msra.mxu0 0.0
    %121 = vmatprep.subr.mxu0 0.0
    %122 = vmatpush1.msra.mxu0 0.0
    %123 = vmatprep.subr.mxu0 0.0
    %124 = vmatpush1.msra.mxu0 0.0
    %125 = vmatprep.subr.mxu0 0.0
    %126 = vmatpush1.msra.mxu0 0.0
    %127 = vmatprep.subr.mxu0 0.0
    %128 = vmatpush1.msra.mxu0 0.0
    %129 = vmatprep.subr.mxu0 0.0
    %130 = vmatpush1.msra.mxu0 0.0
    %131 = vmatprep.subr.mxu0 0.0
    %132 = vmatpush1.msra.mxu0 0.0
    %133 = vmatprep.subr.mxu0 0.0
    %134 = vmatpush1.msra.mxu0 0.0
    %135 = vmatprep.mubr.f32.mxu0 0.0
    %136 = vmatmul.mubr.f32.gmra.mrb[0].mxu0 %v66
    %v137 = vpop.f32.mrb[0].mxu0
    %v138 = vadd.f32 %v63, %v137
    %v139 = vpop.f32.mrb[0].mxu0
    %140 = vmatprep.mubr.f32.mxu0 0.0
    %141 = vmatmul.mubr.f32.gmra.mrb[0].mxu0 %v69
    %v142 = vpop.f32.mrb[0].mxu0
    %v143 = vadd.f32 %v63, %v142
    %v144 = vpop.f32.mrb[0].mxu0
    %145 = vdwg.mxu0
    %v146 = vlaneseq
    %v147 = vshrl.u32 %v146, 7
    %v148 = vsub.s32 0, %v147
    %v149 = vrot.slane %v52, %v148
    %v151 = vsel %vm64, %v21, 0
    %v154 = vsel %vm64, %v22, 0
    %156 = vmatprep.subr.mxu0 0.0
    %157 = vmatpush1.msra.mxu0 %v35
    %158 = vmatprep.subr.mxu0 0.0
    %159 = vmatpush1.msra.mxu0 %v36
    %160 = vmatprep.subr.mxu0 0.0
    %161 = vmatpush1.msra.mxu0 %v37
    %162 = vmatprep.subr.mxu0 0.0
    %163 = vmatpush1.msra.mxu0 %v38
    %164 = vmatprep.subr.mxu0 0.0
    %165 = vmatpush1.msra.mxu0 0.0
    %166 = vmatprep.subr.mxu0 0.0
    %167 = vmatpush1.msra.mxu0 0.0
    %168 = vmatprep.subr.mxu0 0.0
    %169 = vmatpush1.msra.mxu0 0.0
    %170 = vmatprep.subr.mxu0 0.0
    %171 = vmatpush1.msra.mxu0 0.0
    %172 = vmatprep.subr.mxu0 0.0
    %173 = vmatpush1.msra.mxu0 0.0
    %174 = vmatprep.subr.mxu0 0.0
    %175 = vmatpush1.msra.mxu0 0.0
    %176 = vmatprep.subr.mxu0 0.0
    %177 = vmatpush1.msra.mxu0 0.0
    %178 = vmatprep.subr.mxu0 0.0
    %179 = vmatpush1.msra.mxu0 0.0
    %180 = vmatprep.subr.mxu0 0.0
    %181 = vmatpush1.msra.mxu0 0.0
    %182 = vmatprep.subr.mxu0 0.0
    %183 = vmatpush1.msra.mxu0 0.0
    %184 = vmatprep.subr.mxu0 0.0
    %185 = vmatpush1.msra.mxu0 0.0
    %186 = vmatprep.subr.mxu0 0.0
    %187 = vmatpush1.msra.mxu0 0.0
    %188 = vmatprep.subr.mxu0 0.0
    %189 = vmatpush1.msra.mxu0 0.0
    %190 = vmatprep.subr.mxu0 0.0
    %191 = vmatpush1.msra.mxu0 0.0
    %192 = vmatprep.subr.mxu0 0.0
    %193 = vmatpush1.msra.mxu0 0.0
    %194 = vmatprep.subr.mxu0 0.0
    %195 = vmatpush1.msra.mxu0 0.0
    %196 = vmatprep.subr.mxu0 0.0
    %197 = vmatpush1.msra.mxu0 0.0
    %198 = vmatprep.subr.mxu0 0.0
    %199 = vmatpush1.msra.mxu0 0.0
    %200 = vmatprep.subr.mxu0 0.0
    %201 = vmatpush1.msra.mxu0 0.0
    %202 = vmatprep.subr.mxu0 0.0
    %203 = vmatpush1.msra.mxu0 0.0
    %204 = vmatprep.subr.mxu0 0.0
    %205 = vmatpush1.msra.mxu0 0.0
    %206 = vmatprep.subr.mxu0 0.0
    %207 = vmatpush1.msra.mxu0 0.0
    %208 = vmatprep.subr.mxu0 0.0
    %209 = vmatpush1.msra.mxu0 0.0
    %210 = vmatprep.subr.mxu0 0.0
    %211 = vmatpush1.msra.mxu0 0.0
    %212 = vmatprep.subr.mxu0 0.0
    %213 = vmatpush1.msra.mxu0 0.0
    %214 = vmatprep.subr.mxu0 0.0
    %215 = vmatpush1.msra.mxu0 0.0
    %216 = vmatprep.subr.mxu0 0.0
    %217 = vmatpush1.msra.mxu0 0.0
    %218 = vmatprep.subr.mxu0 0.0
    %219 = vmatpush1.msra.mxu0 0.0
    %220 = vmatprep.mubr.f32.mxu0 0.0
    %221 = vmatmul.mubr.f32.gmra.mrb[0].mxu0 %v151
    %v222 = vpop.f32.mrb[0].mxu0
    %v223 = vadd.f32 %v149, %v222
    %v224 = vpop.f32.mrb[0].mxu0
    %225 = vmatprep.mubr.f32.mxu0 0.0
    %226 = vmatmul.mubr.f32.gmra.mrb[0].mxu0 %v154
    %v227 = vpop.f32.mrb[0].mxu0
    %v228 = vadd.f32 %v149, %v227
    %v229 = vpop.f32.mrb[0].mxu0
    %230 = vdwg.mxu0
    %v231 = vlaneseq
    %v232 = vshrl.u32 %v231, 7
    %v233 = vadd.s32 %v232, 8
    %vm234 = vcmp.lt.s32.totalorder %v232, 0
    %v235 = vsub.s32 0, %v232
    %v236 = vsel %vm234, %v235, %v232
    %v237 = vshrl.u32 %v236, 1
    %v238 = vand.u32 %v236, 1
    %v239 = vsub.s32 0, %v238
    %v240 = vsel %vm234, %v239, %v238
    %vm241 = vcmp.lt.s32.totalorder %v233, 0
    %v242 = vsub.s32 0, %v233
    %v243 = vsel %vm241, %v242, %v233
    %v244 = vshrl.u32 %v243, 1
    %v245 = vand.u32 %v243, 1
    %v246 = vsub.s32 0, %v245
    %v247 = vsel %vm241, %v246, %v245
    %vm248 = vcmp.ne.s32.totalorder %v240, 0
    %vm249 = vcmp.ne.s32.totalorder %v247, 0
    %vm250 = vcmp.lt.s32.totalorder %v240, 0
    %vm251 = vcmp.lt.s32.totalorder %v247, 0
    %vm252 = vmand %vm250, %vm248
    %vm253 = vmand %vm251, %vm249
    %v254 = vadd.s32 %v240, 2
    %v255 = vadd.s32 %v247, 2
    %v256 = vsel %vm252, %v254, %v240
    %v257 = vsel %vm253, %v255, %v247
    %v258 = vlaneseq
    %v259 = vand.u32 %v258, 127
    %vm260 = vcmp.lt.s32.totalorder %v259, 0
    %v261 = vsub.s32 0, %v259
    %v262 = vsel %vm260, %v261, %v259
    %v263 = vshrl.u32 %v262, 1
    %v264 = vand.u32 %v262, 1
    %v265 = vsub.s32 0, %v264
    %v266 = vsel %vm260, %v265, %v264
    %vm267 = vcmp.ne.s32.totalorder %v266, 0
    %vm268 = vcmp.lt.s32.totalorder %v266, 0
    %vm269 = vmand %vm268, %vm267
    %v270 = vadd.s32 %v266, 2
    %v271 = vsel %vm269, %v270, %v266
    %vm272 = vcmp.eq.s32.totalorder %v256, %v271
    %vm273 = vcmp.eq.s32.totalorder %v257, %v271
    %v274 = vsel %vm272, 0.0, -1e+30
    %v275 = vsel %vm273, 0.0, -1e+30
    %278 = vrot.lane.b32.xlu0 %v138, 96
    %v279 = vpop.permute.xlu0 %278
    %280 = vrot.lane.b32.xlu0 %v143, 96
    %v281 = vpop.permute.xlu0 %280
    %vm282 = vcmask 64512
    %v283 = vsel %vm282, %v138, 0
    %v285 = vsel %vm282, %v143, 0
    %v287 = vsel %vm282, %v279, 0
    %v289 = vsel %vm282, %v281, 0
    %291 = vmatprep.subr.mxu0 0.0
    %292 = vmatpush1.xpose.msra.mxu0 %v287
    %293 = vmatprep.subr.mxu0 0.0
    %294 = vmatpush1.xpose.msra.mxu0 %v289
    %295 = vmatprep.subr.mxu0 0.0
    %296 = vmatpush1.xpose.msra.mxu0 0.0
    %297 = vmatprep.subr.mxu0 0.0
    %298 = vmatpush1.xpose.msra.mxu0 0.0
    %299 = vmatprep.subr.mxu0 0.0
    %300 = vmatpush1.xpose.msra.mxu0 0.0
    %301 = vmatprep.subr.mxu0 0.0
    %302 = vmatpush1.xpose.msra.mxu0 0.0
    %303 = vmatprep.subr.mxu0 0.0
    %304 = vmatpush1.xpose.msra.mxu0 0.0
    %305 = vmatprep.subr.mxu0 0.0
    %306 = vmatpush1.xpose.msra.mxu0 0.0
    %307 = vmatprep.subr.mxu0 0.0
    %308 = vmatpush1.xpose.msra.mxu0 0.0
    %309 = vmatprep.subr.mxu0 0.0
    %310 = vmatpush1.xpose.msra.mxu0 0.0
    %311 = vmatprep.subr.mxu0 0.0
    %312 = vmatpush1.xpose.msra.mxu0 0.0
    %313 = vmatprep.subr.mxu0 0.0
    %314 = vmatpush1.xpose.msra.mxu0 0.0
    %315 = vmatprep.subr.mxu0 0.0
    %316 = vmatpush1.xpose.msra.mxu0 0.0
    %317 = vmatprep.subr.mxu0 0.0
    %318 = vmatpush1.xpose.msra.mxu0 0.0
    %319 = vmatprep.subr.mxu0 0.0
    %320 = vmatpush1.xpose.msra.mxu0 0.0
    %321 = vmatprep.subr.mxu0 0.0
    %322 = vmatpush1.xpose.msra.mxu0 0.0
    %323 = vmatprep.subr.mxu0 0.0
    %324 = vmatpush1.xpose.msra.mxu0 0.0
    %325 = vmatprep.subr.mxu0 0.0
    %326 = vmatpush1.xpose.msra.mxu0 0.0
    %327 = vmatprep.subr.mxu0 0.0
    %328 = vmatpush1.xpose.msra.mxu0 0.0
    %329 = vmatprep.subr.mxu0 0.0
    %330 = vmatpush1.xpose.msra.mxu0 0.0
    %331 = vmatprep.subr.mxu0 0.0
    %332 = vmatpush1.xpose.msra.mxu0 0.0
    %333 = vmatprep.subr.mxu0 0.0
    %334 = vmatpush1.xpose.msra.mxu0 0.0
    %335 = vmatprep.subr.mxu0 0.0
    %336 = vmatpush1.xpose.msra.mxu0 0.0
    %337 = vmatprep.subr.mxu0 0.0
    %338 = vmatpush1.xpose.msra.mxu0 0.0
    %339 = vmatprep.subr.mxu0 0.0
    %340 = vmatpush1.xpose.msra.mxu0 0.0
    %341 = vmatprep.subr.mxu0 0.0
    %342 = vmatpush1.xpose.msra.mxu0 0.0
    %343 = vmatprep.subr.mxu0 0.0
    %344 = vmatpush1.xpose.msra.mxu0 0.0
    %345 = vmatprep.subr.mxu0 0.0
    %346 = vmatpush1.xpose.msra.mxu0 0.0
    %347 = vmatprep.subr.mxu0 0.0
    %348 = vmatpush1.xpose.msra.mxu0 0.0
    %349 = vmatprep.subr.mxu0 0.0
    %350 = vmatpush1.xpose.msra.mxu0 0.0
    %351 = vmatprep.subr.mxu0 0.0
    %352 = vmatpush1.xpose.msra.mxu0 0.0
    %353 = vmatprep.subr.mxu0 0.0
    %354 = vmatpush1.xpose.msra.mxu0 0.0
    %355 = vmatprep.mubr.f32.mxu0 0.0
    %356 = vmatmul.mubr.f32.gmra.mrb[0].mxu0 %v283
    %v357 = vpop.f32.mrb[0].mxu0
    %v358 = vadd.f32 0.0, %v357
    %v359 = vpop.f32.mrb[0].mxu0
    %360 = vmatprep.mubr.f32.mxu0 0.0
    %361 = vmatmul.mubr.f32.gmra.mrb[0].mxu0 %v285
    %v362 = vpop.f32.mrb[0].mxu0
    %v363 = vadd.f32 0.0, %v362
    %v364 = vpop.f32.mrb[0].mxu0
    %365 = vdwg.mxu0
    %v366 = vmul.f32 %v358, 0.35355338
    %v367 = vmul.f32 %v363, 0.35355338
    %v368 = vadd.f32 %v366, %v274
    %v369 = vadd.f32 %v367, %v275
    %vm370 = vcmask 130048
    %v371 = vsel %vm370, %v368, -inf
    %372 = vmax.xlane.f32.xlu0 %v371
    %v373 = vpop.xlane.xlu0 %372
    %v374 = vsel %vm370, %v369, -inf
    %375 = vmax.xlane.f32.xlu0 %v374
    %v376 = vpop.xlane.xlu0 %375
    %v377 = vsub.f32 %v368, %v373
    %v378 = vsub.f32 %v369, %v376
    %v379 = vmul.f32 %v377, 1.442695
    %v380 = vpow.pop %v379
    %v381 = vmul.f32 %v378, 1.442695
    %v382 = vpow.pop %v381
    %v383 = vsel %vm370, %v380, 0.0
    %384 = vadd.xlane.f32.xlu0 %v383
    %v385 = vpop.xlane.xlu0 %384
    %v386 = vsel %vm370, %v382, 0.0
    %387 = vadd.xlane.f32.xlu0 %v386
    %v388 = vpop.xlane.xlu0 %387
    %v389 = vrcp.pop %v385
    %v390 = vrcp.pop %v388
    %v391 = vmul.f32 %v380, %v389
    %v392 = vmul.f32 %v382, %v390
    %v394 = vsel %vm370, %v391, 0
    %v397 = vsel %vm370, %v392, 0
    %399 = vmatprep.subr.mxu0 0.0
    %400 = vmatpush1.msra.mxu0 %v223
    %401 = vmatprep.subr.mxu0 0.0
    %402 = vmatpush1.msra.mxu0 %v228
    %403 = vmatprep.subr.mxu0 0.0
    %404 = vmatpush1.msra.mxu0 0.0
    %405 = vmatprep.subr.mxu0 0.0
    %406 = vmatpush1.msra.mxu0 0.0
    %407 = vmatprep.subr.mxu0 0.0
    %408 = vmatpush1.msra.mxu0 0.0
    %409 = vmatprep.subr.mxu0 0.0
    %410 = vmatpush1.msra.mxu0 0.0
    %411 = vmatprep.subr.mxu0 0.0
    %412 = vmatpush1.msra.mxu0 0.0
    %413 = vmatprep.subr.mxu0 0.0
    %414 = vmatpush1.msra.mxu0 0.0
    %415 = vmatprep.subr.mxu0 0.0
    %416 = vmatpush1.msra.mxu0 0.0
    %417 = vmatprep.subr.mxu0 0.0
    %418 = vmatpush1.msra.mxu0 0.0
    %419 = vmatprep.subr.mxu0 0.0
    %420 = vmatpush1.msra.mxu0 0.0
    %421 = vmatprep.subr.mxu0 0.0
    %422 = vmatpush1.msra.mxu0 0.0
    %423 = vmatprep.subr.mxu0 0.0
    %424 = vmatpush1.msra.mxu0 0.0
    %425 = vmatprep.subr.mxu0 0.0
    %426 = vmatpush1.msra.mxu0 0.0
    %427 = vmatprep.subr.mxu0 0.0
    %428 = vmatpush1.msra.mxu0 0.0
    %429 = vmatprep.subr.mxu0 0.0
    %430 = vmatpush1.msra.mxu0 0.0
    %431 = vmatprep.subr.mxu0 0.0
    %432 = vmatpush1.msra.mxu0 0.0
    %433 = vmatprep.subr.mxu0 0.0
    %434 = vmatpush1.msra.mxu0 0.0
    %435 = vmatprep.subr.mxu0 0.0
    %436 = vmatpush1.msra.mxu0 0.0
    %437 = vmatprep.subr.mxu0 0.0
    %438 = vmatpush1.msra.mxu0 0.0
    %439 = vmatprep.subr.mxu0 0.0
    %440 = vmatpush1.msra.mxu0 0.0
    %441 = vmatprep.subr.mxu0 0.0
    %442 = vmatpush1.msra.mxu0 0.0
    %443 = vmatprep.subr.mxu0 0.0
    %444 = vmatpush1.msra.mxu0 0.0
    %445 = vmatprep.subr.mxu0 0.0
    %446 = vmatpush1.msra.mxu0 0.0
    %447 = vmatprep.subr.mxu0 0.0
    %448 = vmatpush1.msra.mxu0 0.0
    %449 = vmatprep.subr.mxu0 0.0
    %450 = vmatpush1.msra.mxu0 0.0
    %451 = vmatprep.subr.mxu0 0.0
    %452 = vmatpush1.msra.mxu0 0.0
    %453 = vmatprep.subr.mxu0 0.0
    %454 = vmatpush1.msra.mxu0 0.0
    %455 = vmatprep.subr.mxu0 0.0
    %456 = vmatpush1.msra.mxu0 0.0
    %457 = vmatprep.subr.mxu0 0.0
    %458 = vmatpush1.msra.mxu0 0.0
    %459 = vmatprep.subr.mxu0 0.0
    %460 = vmatpush1.msra.mxu0 0.0
    %461 = vmatprep.subr.mxu0 0.0
    %462 = vmatpush1.msra.mxu0 0.0
    %463 = vmatprep.mubr.f32.mxu0 0.0
    %464 = vmatmul.mubr.f32.gmra.mrb[0].mxu0 %v394
    %v465 = vpop.f32.mrb[0].mxu0
    %v466 = vadd.f32 0.0, %v465
    %v467 = vpop.f32.mrb[0].mxu0
    %468 = vmatprep.mubr.f32.mxu0 0.0
    %469 = vmatmul.mubr.f32.gmra.mrb[0].mxu0 %v397
    %v470 = vpop.f32.mrb[0].mxu0
    %v471 = vadd.f32 0.0, %v470
    %v472 = vpop.f32.mrb[0].mxu0
    %473 = vdwg.mxu0
    %474 = vrot.lane.b32.xlu0 %v138, 120
    %v475 = vpop.permute.xlu0 %474
    %476 = vrot.lane.b32.xlu0 %v143, 120
    %v477 = vpop.permute.xlu0 %476
    %478 = vrot.lane.b32.xlu0 %v138, 88
    %v479 = vpop.permute.xlu0 %478
    %480 = vrot.lane.b32.xlu0 %v143, 88
    %v481 = vpop.permute.xlu0 %480
    %v482 = vsel %vm282, %v475, 0
    %v484 = vsel %vm282, %v477, 0
    %v486 = vsel %vm282, %v479, 0
    %v488 = vsel %vm282, %v481, 0
    %490 = vmatprep.subr.mxu0 0.0
    %491 = vmatpush1.xpose.msra.mxu0 %v486
    %492 = vmatprep.subr.mxu0 0.0
    %493 = vmatpush1.xpose.msra.mxu0 %v488
    %494 = vmatprep.subr.mxu0 0.0
    %495 = vmatpush1.xpose.msra.mxu0 0.0
    %496 = vmatprep.subr.mxu0 0.0
    %497 = vmatpush1.xpose.msra.mxu0 0.0
    %498 = vmatprep.subr.mxu0 0.0
    %499 = vmatpush1.xpose.msra.mxu0 0.0
    %500 = vmatprep.subr.mxu0 0.0
    %501 = vmatpush1.xpose.msra.mxu0 0.0
    %502 = vmatprep.subr.mxu0 0.0
    %503 = vmatpush1.xpose.msra.mxu0 0.0
    %504 = vmatprep.subr.mxu0 0.0
    %505 = vmatpush1.xpose.msra.mxu0 0.0
    %506 = vmatprep.subr.mxu0 0.0
    %507 = vmatpush1.xpose.msra.mxu0 0.0
    %508 = vmatprep.subr.mxu0 0.0
    %509 = vmatpush1.xpose.msra.mxu0 0.0
    %510 = vmatprep.subr.mxu0 0.0
    %511 = vmatpush1.xpose.msra.mxu0 0.0
    %512 = vmatprep.subr.mxu0 0.0
    %513 = vmatpush1.xpose.msra.mxu0 0.0
    %514 = vmatprep.subr.mxu0 0.0
    %515 = vmatpush1.xpose.msra.mxu0 0.0
    %516 = vmatprep.subr.mxu0 0.0
    %517 = vmatpush1.xpose.msra.mxu0 0.0
    %518 = vmatprep.subr.mxu0 0.0
    %519 = vmatpush1.xpose.msra.mxu0 0.0
    %520 = vmatprep.subr.mxu0 0.0
    %521 = vmatpush1.xpose.msra.mxu0 0.0
    %522 = vmatprep.subr.mxu0 0.0
    %523 = vmatpush1.xpose.msra.mxu0 0.0
    %524 = vmatprep.subr.mxu0 0.0
    %525 = vmatpush1.xpose.msra.mxu0 0.0
    %526 = vmatprep.subr.mxu0 0.0
    %527 = vmatpush1.xpose.msra.mxu0 0.0
    %528 = vmatprep.subr.mxu0 0.0
    %529 = vmatpush1.xpose.msra.mxu0 0.0
    %530 = vmatprep.subr.mxu0 0.0
    %531 = vmatpush1.xpose.msra.mxu0 0.0
    %532 = vmatprep.subr.mxu0 0.0
    %533 = vmatpush1.xpose.msra.mxu0 0.0
    %534 = vmatprep.subr.mxu0 0.0
    %535 = vmatpush1.xpose.msra.mxu0 0.0
    %536 = vmatprep.subr.mxu0 0.0
    %537 = vmatpush1.xpose.msra.mxu0 0.0
    %538 = vmatprep.subr.mxu0 0.0
    %539 = vmatpush1.xpose.msra.mxu0 0.0
    %540 = vmatprep.subr.mxu0 0.0
    %541 = vmatpush1.xpose.msra.mxu0 0.0
    %542 = vmatprep.subr.mxu0 0.0
    %543 = vmatpush1.xpose.msra.mxu0 0.0
    %544 = vmatprep.subr.mxu0 0.0
    %545 = vmatpush1.xpose.msra.mxu0 0.0
    %546 = vmatprep.subr.mxu0 0.0
    %547 = vmatpush1.xpose.msra.mxu0 0.0
    %548 = vmatprep.subr.mxu0 0.0
    %549 = vmatpush1.xpose.msra.mxu0 0.0
    %550 = vmatprep.subr.mxu0 0.0
    %551 = vmatpush1.xpose.msra.mxu0 0.0
    %552 = vmatprep.subr.mxu0 0.0
    %553 = vmatpush1.xpose.msra.mxu0 0.0
    %554 = vmatprep.mubr.f32.mxu0 0.0
    %555 = vmatmul.mubr.f32.gmra.mrb[0].mxu0 %v482
    %v556 = vpop.f32.mrb[0].mxu0
    %v557 = vadd.f32 0.0, %v556
    %v558 = vpop.f32.mrb[0].mxu0
    %559 = vmatprep.mubr.f32.mxu0 0.0
    %560 = vmatmul.mubr.f32.gmra.mrb[0].mxu0 %v484
    %v561 = vpop.f32.mrb[0].mxu0
    %v562 = vadd.f32 0.0, %v561
    %v563 = vpop.f32.mrb[0].mxu0
    %564 = vdwg.mxu0
    %v565 = vmul.f32 %v557, 0.35355338
    %v566 = vmul.f32 %v562, 0.35355338
    %v567 = vadd.f32 %v565, %v274
    %v568 = vadd.f32 %v566, %v275
    %v569 = vsel %vm370, %v567, -inf
    %570 = vmax.xlane.f32.xlu0 %v569
    %v571 = vpop.xlane.xlu0 %570
    %v572 = vsel %vm370, %v568, -inf
    %573 = vmax.xlane.f32.xlu0 %v572
    %v574 = vpop.xlane.xlu0 %573
    %v575 = vsub.f32 %v567, %v571
    %v576 = vsub.f32 %v568, %v574
    %v577 = vmul.f32 %v575, 1.442695
    %v578 = vpow.pop %v577
    %v579 = vmul.f32 %v576, 1.442695
    %v580 = vpow.pop %v579
    %v581 = vsel %vm370, %v578, 0.0
    %582 = vadd.xlane.f32.xlu0 %v581
    %v583 = vpop.xlane.xlu0 %582
    %v584 = vsel %vm370, %v580, 0.0
    %585 = vadd.xlane.f32.xlu0 %v584
    %v586 = vpop.xlane.xlu0 %585
    %v587 = vrcp.pop %v583
    %v588 = vrcp.pop %v586
    %v589 = vmul.f32 %v578, %v587
    %v590 = vmul.f32 %v580, %v588
    %593 = vrot.lane.b32.xlu0 %v223, 120
    %v594 = vpop.permute.xlu0 %593
    %595 = vrot.lane.b32.xlu0 %v228, 120
    %v596 = vpop.permute.xlu0 %595
    %v600 = vsel %vm370, %v589, 0
    %v603 = vsel %vm370, %v590, 0
    %605 = vmatprep.subr.mxu0 0.0
    %606 = vmatpush1.msra.mxu0 %v594
    %607 = vmatprep.subr.mxu0 0.0
    %608 = vmatpush1.msra.mxu0 %v596
    %609 = vmatprep.subr.mxu0 0.0
    %610 = vmatpush1.msra.mxu0 0.0
    %611 = vmatprep.subr.mxu0 0.0
    %612 = vmatpush1.msra.mxu0 0.0
    %613 = vmatprep.subr.mxu0 0.0
    %614 = vmatpush1.msra.mxu0 0.0
    %615 = vmatprep.subr.mxu0 0.0
    %616 = vmatpush1.msra.mxu0 0.0
    %617 = vmatprep.subr.mxu0 0.0
    %618 = vmatpush1.msra.mxu0 0.0
    %619 = vmatprep.subr.mxu0 0.0
    %620 = vmatpush1.msra.mxu0 0.0
    %621 = vmatprep.subr.mxu0 0.0
    %622 = vmatpush1.msra.mxu0 0.0
    %623 = vmatprep.subr.mxu0 0.0
    %624 = vmatpush1.msra.mxu0 0.0
    %625 = vmatprep.subr.mxu0 0.0
    %626 = vmatpush1.msra.mxu0 0.0
    %627 = vmatprep.subr.mxu0 0.0
    %628 = vmatpush1.msra.mxu0 0.0
    %629 = vmatprep.subr.mxu0 0.0
    %630 = vmatpush1.msra.mxu0 0.0
    %631 = vmatprep.subr.mxu0 0.0
    %632 = vmatpush1.msra.mxu0 0.0
    %633 = vmatprep.subr.mxu0 0.0
    %634 = vmatpush1.msra.mxu0 0.0
    %635 = vmatprep.subr.mxu0 0.0
    %636 = vmatpush1.msra.mxu0 0.0
    %637 = vmatprep.subr.mxu0 0.0
    %638 = vmatpush1.msra.mxu0 0.0
    %639 = vmatprep.subr.mxu0 0.0
    %640 = vmatpush1.msra.mxu0 0.0
    %641 = vmatprep.subr.mxu0 0.0
    %642 = vmatpush1.msra.mxu0 0.0
    %643 = vmatprep.subr.mxu0 0.0
    %644 = vmatpush1.msra.mxu0 0.0
    %645 = vmatprep.subr.mxu0 0.0
    %646 = vmatpush1.msra.mxu0 0.0
    %647 = vmatprep.subr.mxu0 0.0
    %648 = vmatpush1.msra.mxu0 0.0
    %649 = vmatprep.subr.mxu0 0.0
    %650 = vmatpush1.msra.mxu0 0.0
    %651 = vmatprep.subr.mxu0 0.0
    %652 = vmatpush1.msra.mxu0 0.0
    %653 = vmatprep.subr.mxu0 0.0
    %654 = vmatpush1.msra.mxu0 0.0
    %655 = vmatprep.subr.mxu0 0.0
    %656 = vmatpush1.msra.mxu0 0.0
    %657 = vmatprep.subr.mxu0 0.0
    %658 = vmatpush1.msra.mxu0 0.0
    %659 = vmatprep.subr.mxu0 0.0
    %660 = vmatpush1.msra.mxu0 0.0
    %661 = vmatprep.subr.mxu0 0.0
    %662 = vmatpush1.msra.mxu0 0.0
    %663 = vmatprep.subr.mxu0 0.0
    %664 = vmatpush1.msra.mxu0 0.0
    %665 = vmatprep.subr.mxu0 0.0
    %666 = vmatpush1.msra.mxu0 0.0
    %667 = vmatprep.subr.mxu0 0.0
    %668 = vmatpush1.msra.mxu0 0.0
    %669 = vmatprep.mubr.f32.mxu0 0.0
    %670 = vmatmul.mubr.f32.gmra.mrb[0].mxu0 %v600
    %v671 = vpop.f32.mrb[0].mxu0
    %v672 = vadd.f32 0.0, %v671
    %v673 = vpop.f32.mrb[0].mxu0
    %674 = vmatprep.mubr.f32.mxu0 0.0
    %675 = vmatmul.mubr.f32.gmra.mrb[0].mxu0 %v603
    %v676 = vpop.f32.mrb[0].mxu0
    %v677 = vadd.f32 0.0, %v676
    %v678 = vpop.f32.mrb[0].mxu0
    %679 = vdwg.mxu0
    %v681 = vsel %vm282, %v672, 0
    %v684 = vsel %vm282, %v677, 0
    %686 = vmatprep.subr.mxu0 0.0
    %687 = vmatpush1.msra.mxu0 %v40
    %688 = vmatprep.subr.mxu0 0.0
    %689 = vmatpush1.msra.mxu0 0.0
    %690 = vmatprep.subr.mxu0 0.0
    %691 = vmatpush1.msra.mxu0 0.0
    %692 = vmatprep.subr.mxu0 0.0
    %693 = vmatpush1.msra.mxu0 0.0
    %694 = vmatprep.subr.mxu0 0.0
    %695 = vmatpush1.msra.mxu0 0.0
    %696 = vmatprep.subr.mxu0 0.0
    %697 = vmatpush1.msra.mxu0 0.0
    %698 = vmatprep.subr.mxu0 0.0
    %699 = vmatpush1.msra.mxu0 0.0
    %700 = vmatprep.subr.mxu0 0.0
    %701 = vmatpush1.msra.mxu0 0.0
    %702 = vmatprep.subr.mxu0 0.0
    %703 = vmatpush1.msra.mxu0 0.0
    %704 = vmatprep.subr.mxu0 0.0
    %705 = vmatpush1.msra.mxu0 0.0
    %706 = vmatprep.subr.mxu0 0.0
    %707 = vmatpush1.msra.mxu0 0.0
    %708 = vmatprep.subr.mxu0 0.0
    %709 = vmatpush1.msra.mxu0 0.0
    %710 = vmatprep.subr.mxu0 0.0
    %711 = vmatpush1.msra.mxu0 0.0
    %712 = vmatprep.subr.mxu0 0.0
    %713 = vmatpush1.msra.mxu0 0.0
    %714 = vmatprep.subr.mxu0 0.0
    %715 = vmatpush1.msra.mxu0 0.0
    %716 = vmatprep.subr.mxu0 0.0
    %717 = vmatpush1.msra.mxu0 0.0
    %718 = vmatprep.subr.mxu0 0.0
    %719 = vmatpush1.msra.mxu0 0.0
    %720 = vmatprep.subr.mxu0 0.0
    %721 = vmatpush1.msra.mxu0 0.0
    %722 = vmatprep.subr.mxu0 0.0
    %723 = vmatpush1.msra.mxu0 0.0
    %724 = vmatprep.subr.mxu0 0.0
    %725 = vmatpush1.msra.mxu0 0.0
    %726 = vmatprep.subr.mxu0 0.0
    %727 = vmatpush1.msra.mxu0 0.0
    %728 = vmatprep.subr.mxu0 0.0
    %729 = vmatpush1.msra.mxu0 0.0
    %730 = vmatprep.subr.mxu0 0.0
    %731 = vmatpush1.msra.mxu0 0.0
    %732 = vmatprep.subr.mxu0 0.0
    %733 = vmatpush1.msra.mxu0 0.0
    %734 = vmatprep.subr.mxu0 0.0
    %735 = vmatpush1.msra.mxu0 0.0
    %736 = vmatprep.subr.mxu0 0.0
    %737 = vmatpush1.msra.mxu0 0.0
    %738 = vmatprep.subr.mxu0 0.0
    %739 = vmatpush1.msra.mxu0 0.0
    %740 = vmatprep.subr.mxu0 0.0
    %741 = vmatpush1.msra.mxu0 0.0
    %742 = vmatprep.subr.mxu0 0.0
    %743 = vmatpush1.msra.mxu0 0.0
    %744 = vmatprep.subr.mxu0 0.0
    %745 = vmatpush1.msra.mxu0 0.0
    %746 = vmatprep.subr.mxu0 0.0
    %747 = vmatpush1.msra.mxu0 0.0
    %748 = vmatprep.subr.mxu0 0.0
    %749 = vmatpush1.msra.mxu0 0.0
    %750 = vmatprep.mubr.f32.mxu0 0.0
    %751 = vmatmul.mubr.f32.gmra.mrb[0].mxu0 %v681
    %v752 = vpop.f32.mrb[0].mxu0
    %v753 = vadd.f32 0.0, %v752
    %v754 = vpop.f32.mrb[0].mxu0
    %755 = vmatprep.mubr.f32.mxu0 0.0
    %756 = vmatmul.mubr.f32.gmra.mrb[0].mxu0 %v684
    %v757 = vpop.f32.mrb[0].mxu0
    %v758 = vadd.f32 0.0, %v757
    %v759 = vpop.f32.mrb[0].mxu0
    %760 = vdwg.mxu0
    %v762 = vsel %vm282, %v466, 0
    %v765 = vsel %vm282, %v471, 0
    %767 = vmatprep.subr.mxu0 0.0
    %768 = vmatpush1.msra.mxu0 %v39
    %769 = vmatprep.subr.mxu0 0.0
    %770 = vmatpush1.msra.mxu0 0.0
    %771 = vmatprep.subr.mxu0 0.0
    %772 = vmatpush1.msra.mxu0 0.0
    %773 = vmatprep.subr.mxu0 0.0
    %774 = vmatpush1.msra.mxu0 0.0
    %775 = vmatprep.subr.mxu0 0.0
    %776 = vmatpush1.msra.mxu0 0.0
    %777 = vmatprep.subr.mxu0 0.0
    %778 = vmatpush1.msra.mxu0 0.0
    %779 = vmatprep.subr.mxu0 0.0
    %780 = vmatpush1.msra.mxu0 0.0
    %781 = vmatprep.subr.mxu0 0.0
    %782 = vmatpush1.msra.mxu0 0.0
    %783 = vmatprep.subr.mxu0 0.0
    %784 = vmatpush1.msra.mxu0 0.0
    %785 = vmatprep.subr.mxu0 0.0
    %786 = vmatpush1.msra.mxu0 0.0
    %787 = vmatprep.subr.mxu0 0.0
    %788 = vmatpush1.msra.mxu0 0.0
    %789 = vmatprep.subr.mxu0 0.0
    %790 = vmatpush1.msra.mxu0 0.0
    %791 = vmatprep.subr.mxu0 0.0
    %792 = vmatpush1.msra.mxu0 0.0
    %793 = vmatprep.subr.mxu0 0.0
    %794 = vmatpush1.msra.mxu0 0.0
    %795 = vmatprep.subr.mxu0 0.0
    %796 = vmatpush1.msra.mxu0 0.0
    %797 = vmatprep.subr.mxu0 0.0
    %798 = vmatpush1.msra.mxu0 0.0
    %799 = vmatprep.subr.mxu0 0.0
    %800 = vmatpush1.msra.mxu0 0.0
    %801 = vmatprep.subr.mxu0 0.0
    %802 = vmatpush1.msra.mxu0 0.0
    %803 = vmatprep.subr.mxu0 0.0
    %804 = vmatpush1.msra.mxu0 0.0
    %805 = vmatprep.subr.mxu0 0.0
    %806 = vmatpush1.msra.mxu0 0.0
    %807 = vmatprep.subr.mxu0 0.0
    %808 = vmatpush1.msra.mxu0 0.0
    %809 = vmatprep.subr.mxu0 0.0
    %810 = vmatpush1.msra.mxu0 0.0
    %811 = vmatprep.subr.mxu0 0.0
    %812 = vmatpush1.msra.mxu0 0.0
    %813 = vmatprep.subr.mxu0 0.0
    %814 = vmatpush1.msra.mxu0 0.0
    %815 = vmatprep.subr.mxu0 0.0
    %816 = vmatpush1.msra.mxu0 0.0
    %817 = vmatprep.subr.mxu0 0.0
    %818 = vmatpush1.msra.mxu0 0.0
    %819 = vmatprep.subr.mxu0 0.0
    %820 = vmatpush1.msra.mxu0 0.0
    %821 = vmatprep.subr.mxu0 0.0
    %822 = vmatpush1.msra.mxu0 0.0
    %823 = vmatprep.subr.mxu0 0.0
    %824 = vmatpush1.msra.mxu0 0.0
    %825 = vmatprep.subr.mxu0 0.0
    %826 = vmatpush1.msra.mxu0 0.0
    %827 = vmatprep.subr.mxu0 0.0
    %828 = vmatpush1.msra.mxu0 0.0
    %829 = vmatprep.subr.mxu0 0.0
    %830 = vmatpush1.msra.mxu0 0.0
    %831 = vmatprep.mubr.f32.mxu0 0.0
    %832 = vmatmul.mubr.f32.gmra.mrb[0].mxu0 %v762
    %v833 = vpop.f32.mrb[0].mxu0
    %v834 = vadd.f32 %v753, %v833
    %v835 = vpop.f32.mrb[0].mxu0
    %836 = vmatprep.mubr.f32.mxu0 0.0
    %837 = vmatmul.mubr.f32.gmra.mrb[0].mxu0 %v765
    %v838 = vpop.f32.mrb[0].mxu0
    %v839 = vadd.f32 %v758, %v838
    %v840 = vpop.f32.mrb[0].mxu0
    %841 = vdwg.mxu0
    %842 = vrot.lane.b32.xlu0 %v138, 112
    %v843 = vpop.permute.xlu0 %842
    %844 = vrot.lane.b32.xlu0 %v143, 112
    %v845 = vpop.permute.xlu0 %844
    %846 = vrot.lane.b32.xlu0 %v138, 80
    %v847 = vpop.permute.xlu0 %846
    %848 = vrot.lane.b32.xlu0 %v143, 80
    %v849 = vpop.permute.xlu0 %848
    %v850 = vsel %vm282, %v843, 0
    %v852 = vsel %vm282, %v845, 0
    %v854 = vsel %vm282, %v847, 0
    %v856 = vsel %vm282, %v849, 0
    %858 = vmatprep.subr.mxu0 0.0
    %859 = vmatpush1.xpose.msra.mxu0 %v854
    %860 = vmatprep.subr.mxu0 0.0
    %861 = vmatpush1.xpose.msra.mxu0 %v856
    %862 = vmatprep.subr.mxu0 0.0
    %863 = vmatpush1.xpose.msra.mxu0 0.0
    %864 = vmatprep.subr.mxu0 0.0
    %865 = vmatpush1.xpose.msra.mxu0 0.0
    %866 = vmatprep.subr.mxu0 0.0
    %867 = vmatpush1.xpose.msra.mxu0 0.0
    %868 = vmatprep.subr.mxu0 0.0
    %869 = vmatpush1.xpose.msra.mxu0 0.0
    %870 = vmatprep.subr.mxu0 0.0
    %871 = vmatpush1.xpose.msra.mxu0 0.0
    %872 = vmatprep.subr.mxu0 0.0
    %873 = vmatpush1.xpose.msra.mxu0 0.0
    %874 = vmatprep.subr.mxu0 0.0
    %875 = vmatpush1.xpose.msra.mxu0 0.0
    %876 = vmatprep.subr.mxu0 0.0
    %877 = vmatpush1.xpose.msra.mxu0 0.0
    %878 = vmatprep.subr.mxu0 0.0
    %879 = vmatpush1.xpose.msra.mxu0 0.0
    %880 = vmatprep.subr.mxu0 0.0
    %881 = vmatpush1.xpose.msra.mxu0 0.0
    %882 = vmatprep.subr.mxu0 0.0
    %883 = vmatpush1.xpose.msra.mxu0 0.0
    %884 = vmatprep.subr.mxu0 0.0
    %885 = vmatpush1.xpose.msra.mxu0 0.0
    %886 = vmatprep.subr.mxu0 0.0
    %887 = vmatpush1.xpose.msra.mxu0 0.0
    %888 = vmatprep.subr.mxu0 0.0
    %889 = vmatpush1.xpose.msra.mxu0 0.0
    %890 = vmatprep.subr.mxu0 0.0
    %891 = vmatpush1.xpose.msra.mxu0 0.0
    %892 = vmatprep.subr.mxu0 0.0
    %893 = vmatpush1.xpose.msra.mxu0 0.0
    %894 = vmatprep.subr.mxu0 0.0
    %895 = vmatpush1.xpose.msra.mxu0 0.0
    %896 = vmatprep.subr.mxu0 0.0
    %897 = vmatpush1.xpose.msra.mxu0 0.0
    %898 = vmatprep.subr.mxu0 0.0
    %899 = vmatpush1.xpose.msra.mxu0 0.0
    %900 = vmatprep.subr.mxu0 0.0
    %901 = vmatpush1.xpose.msra.mxu0 0.0
    %902 = vmatprep.subr.mxu0 0.0
    %903 = vmatpush1.xpose.msra.mxu0 0.0
    %904 = vmatprep.subr.mxu0 0.0
    %905 = vmatpush1.xpose.msra.mxu0 0.0
    %906 = vmatprep.subr.mxu0 0.0
    %907 = vmatpush1.xpose.msra.mxu0 0.0
    %908 = vmatprep.subr.mxu0 0.0
    %909 = vmatpush1.xpose.msra.mxu0 0.0
    %910 = vmatprep.subr.mxu0 0.0
    %911 = vmatpush1.xpose.msra.mxu0 0.0
    %912 = vmatprep.subr.mxu0 0.0
    %913 = vmatpush1.xpose.msra.mxu0 0.0
    %914 = vmatprep.subr.mxu0 0.0
    %915 = vmatpush1.xpose.msra.mxu0 0.0
    %916 = vmatprep.subr.mxu0 0.0
    %917 = vmatpush1.xpose.msra.mxu0 0.0
    %918 = vmatprep.subr.mxu0 0.0
    %919 = vmatpush1.xpose.msra.mxu0 0.0
    %920 = vmatprep.subr.mxu0 0.0
    %921 = vmatpush1.xpose.msra.mxu0 0.0
    %922 = vmatprep.mubr.f32.mxu0 0.0
    %923 = vmatmul.mubr.f32.gmra.mrb[0].mxu0 %v850
    %v924 = vpop.f32.mrb[0].mxu0
    %v925 = vadd.f32 0.0, %v924
    %v926 = vpop.f32.mrb[0].mxu0
    %927 = vmatprep.mubr.f32.mxu0 0.0
    %928 = vmatmul.mubr.f32.gmra.mrb[0].mxu0 %v852
    %v929 = vpop.f32.mrb[0].mxu0
    %v930 = vadd.f32 0.0, %v929
    %v931 = vpop.f32.mrb[0].mxu0
    %932 = vdwg.mxu0
    %v933 = vmul.f32 %v925, 0.35355338
    %v934 = vmul.f32 %v930, 0.35355338
    %v935 = vadd.f32 %v933, %v274
    %v936 = vadd.f32 %v934, %v275
    %v937 = vsel %vm370, %v935, -inf
    %938 = vmax.xlane.f32.xlu0 %v937
    %v939 = vpop.xlane.xlu0 %938
    %v940 = vsel %vm370, %v936, -inf
    %941 = vmax.xlane.f32.xlu0 %v940
    %v942 = vpop.xlane.xlu0 %941
    %v943 = vsub.f32 %v935, %v939
    %v944 = vsub.f32 %v936, %v942
    %v945 = vmul.f32 %v943, 1.442695
    %v946 = vpow.pop %v945
    %v947 = vmul.f32 %v944, 1.442695
    %v948 = vpow.pop %v947
    %v949 = vsel %vm370, %v946, 0.0
    %950 = vadd.xlane.f32.xlu0 %v949
    %v951 = vpop.xlane.xlu0 %950
    %v952 = vsel %vm370, %v948, 0.0
    %953 = vadd.xlane.f32.xlu0 %v952
    %v954 = vpop.xlane.xlu0 %953
    %v955 = vrcp.pop %v951
    %v956 = vrcp.pop %v954
    %v957 = vmul.f32 %v946, %v955
    %v958 = vmul.f32 %v948, %v956
    %959 = vrot.lane.b32.xlu0 %v223, 112
    %v960 = vpop.permute.xlu0 %959
    %961 = vrot.lane.b32.xlu0 %v228, 112
    %v962 = vpop.permute.xlu0 %961
    %v966 = vsel %vm370, %v957, 0
    %v969 = vsel %vm370, %v958, 0
    %971 = vmatprep.subr.mxu0 0.0
    %972 = vmatpush1.msra.mxu0 %v960
    %973 = vmatprep.subr.mxu0 0.0
    %974 = vmatpush1.msra.mxu0 %v962
    %975 = vmatprep.subr.mxu0 0.0
    %976 = vmatpush1.msra.mxu0 0.0
    %977 = vmatprep.subr.mxu0 0.0
    %978 = vmatpush1.msra.mxu0 0.0
    %979 = vmatprep.subr.mxu0 0.0
    %980 = vmatpush1.msra.mxu0 0.0
    %981 = vmatprep.subr.mxu0 0.0
    %982 = vmatpush1.msra.mxu0 0.0
    %983 = vmatprep.subr.mxu0 0.0
    %984 = vmatpush1.msra.mxu0 0.0
    %985 = vmatprep.subr.mxu0 0.0
    %986 = vmatpush1.msra.mxu0 0.0
    %987 = vmatprep.subr.mxu0 0.0
    %988 = vmatpush1.msra.mxu0 0.0
    %989 = vmatprep.subr.mxu0 0.0
    %990 = vmatpush1.msra.mxu0 0.0
    %991 = vmatprep.subr.mxu0 0.0
    %992 = vmatpush1.msra.mxu0 0.0
    %993 = vmatprep.subr.mxu0 0.0
    %994 = vmatpush1.msra.mxu0 0.0
    %995 = vmatprep.subr.mxu0 0.0
    %996 = vmatpush1.msra.mxu0 0.0
    %997 = vmatprep.subr.mxu0 0.0
    %998 = vmatpush1.msra.mxu0 0.0
    %999 = vmatprep.subr.mxu0 0.0
    %1000 = vmatpush1.msra.mxu0 0.0
    %1001 = vmatprep.subr.mxu0 0.0
    %1002 = vmatpush1.msra.mxu0 0.0
    %1003 = vmatprep.subr.mxu0 0.0
    %1004 = vmatpush1.msra.mxu0 0.0
    %1005 = vmatprep.subr.mxu0 0.0
    %1006 = vmatpush1.msra.mxu0 0.0
    %1007 = vmatprep.subr.mxu0 0.0
    %1008 = vmatpush1.msra.mxu0 0.0
    %1009 = vmatprep.subr.mxu0 0.0
    %1010 = vmatpush1.msra.mxu0 0.0
    %1011 = vmatprep.subr.mxu0 0.0
    %1012 = vmatpush1.msra.mxu0 0.0
    %1013 = vmatprep.subr.mxu0 0.0
    %1014 = vmatpush1.msra.mxu0 0.0
    %1015 = vmatprep.subr.mxu0 0.0
    %1016 = vmatpush1.msra.mxu0 0.0
    %1017 = vmatprep.subr.mxu0 0.0
    %1018 = vmatpush1.msra.mxu0 0.0
    %1019 = vmatprep.subr.mxu0 0.0
    %1020 = vmatpush1.msra.mxu0 0.0
    %1021 = vmatprep.subr.mxu0 0.0
    %1022 = vmatpush1.msra.mxu0 0.0
    %1023 = vmatprep.subr.mxu0 0.0
    %1024 = vmatpush1.msra.mxu0 0.0
    %1025 = vmatprep.subr.mxu0 0.0
    %1026 = vmatpush1.msra.mxu0 0.0
    %1027 = vmatprep.subr.mxu0 0.0
    %1028 = vmatpush1.msra.mxu0 0.0
    %1029 = vmatprep.subr.mxu0 0.0
    %1030 = vmatpush1.msra.mxu0 0.0
    %1031 = vmatprep.subr.mxu0 0.0
    %1032 = vmatpush1.msra.mxu0 0.0
    %1033 = vmatprep.subr.mxu0 0.0
    %1034 = vmatpush1.msra.mxu0 0.0
    %1035 = vmatprep.mubr.f32.mxu0 0.0
    %1036 = vmatmul.mubr.f32.gmra.mrb[0].mxu0 %v966
    %v1037 = vpop.f32.mrb[0].mxu0
    %v1038 = vadd.f32 0.0, %v1037
    %v1039 = vpop.f32.mrb[0].mxu0
    %1040 = vmatprep.mubr.f32.mxu0 0.0
    %1041 = vmatmul.mubr.f32.gmra.mrb[0].mxu0 %v969
    %v1042 = vpop.f32.mrb[0].mxu0
    %v1043 = vadd.f32 0.0, %v1042
    %v1044 = vpop.f32.mrb[0].mxu0
    %1045 = vdwg.mxu0
    %v1047 = vsel %vm282, %v1038, 0
    %v1050 = vsel %vm282, %v1043, 0
    %1052 = vmatprep.subr.mxu0 0.0
    %1053 = vmatpush1.msra.mxu0 %v41
    %1054 = vmatprep.subr.mxu0 0.0
    %1055 = vmatpush1.msra.mxu0 0.0
    %1056 = vmatprep.subr.mxu0 0.0
    %1057 = vmatpush1.msra.mxu0 0.0
    %1058 = vmatprep.subr.mxu0 0.0
    %1059 = vmatpush1.msra.mxu0 0.0
    %1060 = vmatprep.subr.mxu0 0.0
    %1061 = vmatpush1.msra.mxu0 0.0
    %1062 = vmatprep.subr.mxu0 0.0
    %1063 = vmatpush1.msra.mxu0 0.0
    %1064 = vmatprep.subr.mxu0 0.0
    %1065 = vmatpush1.msra.mxu0 0.0
    %1066 = vmatprep.subr.mxu0 0.0
    %1067 = vmatpush1.msra.mxu0 0.0
    %1068 = vmatprep.subr.mxu0 0.0
    %1069 = vmatpush1.msra.mxu0 0.0
    %1070 = vmatprep.subr.mxu0 0.0
    %1071 = vmatpush1.msra.mxu0 0.0
    %1072 = vmatprep.subr.mxu0 0.0
    %1073 = vmatpush1.msra.mxu0 0.0
    %1074 = vmatprep.subr.mxu0 0.0
    %1075 = vmatpush1.msra.mxu0 0.0
    %1076 = vmatprep.subr.mxu0 0.0
    %1077 = vmatpush1.msra.mxu0 0.0
    %1078 = vmatprep.subr.mxu0 0.0
    %1079 = vmatpush1.msra.mxu0 0.0
    %1080 = vmatprep.subr.mxu0 0.0
    %1081 = vmatpush1.msra.mxu0 0.0
    %1082 = vmatprep.subr.mxu0 0.0
    %1083 = vmatpush1.msra.mxu0 0.0
    %1084 = vmatprep.subr.mxu0 0.0
    %1085 = vmatpush1.msra.mxu0 0.0
    %1086 = vmatprep.subr.mxu0 0.0
    %1087 = vmatpush1.msra.mxu0 0.0
    %1088 = vmatprep.subr.mxu0 0.0
    %1089 = vmatpush1.msra.mxu0 0.0
    %1090 = vmatprep.subr.mxu0 0.0
    %1091 = vmatpush1.msra.mxu0 0.0
    %1092 = vmatprep.subr.mxu0 0.0
    %1093 = vmatpush1.msra.mxu0 0.0
    %1094 = vmatprep.subr.mxu0 0.0
    %1095 = vmatpush1.msra.mxu0 0.0
    %1096 = vmatprep.subr.mxu0 0.0
    %1097 = vmatpush1.msra.mxu0 0.0
    %1098 = vmatprep.subr.mxu0 0.0
    %1099 = vmatpush1.msra.mxu0 0.0
    %1100 = vmatprep.subr.mxu0 0.0
    %1101 = vmatpush1.msra.mxu0 0.0
    %1102 = vmatprep.subr.mxu0 0.0
    %1103 = vmatpush1.msra.mxu0 0.0
    %1104 = vmatprep.subr.mxu0 0.0
    %1105 = vmatpush1.msra.mxu0 0.0
    %1106 = vmatprep.subr.mxu0 0.0
    %1107 = vmatpush1.msra.mxu0 0.0
    %1108 = vmatprep.subr.mxu0 0.0
    %1109 = vmatpush1.msra.mxu0 0.0
    %1110 = vmatprep.subr.mxu0 0.0
    %1111 = vmatpush1.msra.mxu0 0.0
    %1112 = vmatprep.subr.mxu0 0.0
    %1113 = vmatpush1.msra.mxu0 0.0
    %1114 = vmatprep.subr.mxu0 0.0
    %1115 = vmatpush1.msra.mxu0 0.0
    %1116 = vmatprep.mubr.f32.mxu0 0.0
    %1117 = vmatmul.mubr.f32.gmra.mrb[0].mxu0 %v1047
    %v1118 = vpop.f32.mrb[0].mxu0
    %v1119 = vadd.f32 0.0, %v1118
    %v1120 = vpop.f32.mrb[0].mxu0
    %1121 = vmatprep.mubr.f32.mxu0 0.0
    %1122 = vmatmul.mubr.f32.gmra.mrb[0].mxu0 %v1050
    %v1123 = vpop.f32.mrb[0].mxu0
    %v1124 = vadd.f32 0.0, %v1123
    %v1125 = vpop.f32.mrb[0].mxu0
    %1126 = vdwg.mxu0
    %v1127 = vadd.f32 %v834, %v1119
    %v1128 = vadd.f32 %v839, %v1124
    %1129 = vrot.lane.b32.xlu0 %v138, 104
    %v1130 = vpop.permute.xlu0 %1129
    %1131 = vrot.lane.b32.xlu0 %v143, 104
    %v1132 = vpop.permute.xlu0 %1131
    %1133 = vrot.lane.b32.xlu0 %v138, 72
    %v1134 = vpop.permute.xlu0 %1133
    %1135 = vrot.lane.b32.xlu0 %v143, 72
    %v1136 = vpop.permute.xlu0 %1135
    %v1137 = vsel %vm282, %v1130, 0
    %v1139 = vsel %vm282, %v1132, 0
    %v1141 = vsel %vm282, %v1134, 0
    %v1143 = vsel %vm282, %v1136, 0
    %1145 = vmatprep.subr.mxu0 0.0
    %1146 = vmatpush1.xpose.msra.mxu0 %v1141
    %1147 = vmatprep.subr.mxu0 0.0
    %1148 = vmatpush1.xpose.msra.mxu0 %v1143
    %1149 = vmatprep.subr.mxu0 0.0
    %1150 = vmatpush1.xpose.msra.mxu0 0.0
    %1151 = vmatprep.subr.mxu0 0.0
    %1152 = vmatpush1.xpose.msra.mxu0 0.0
    %1153 = vmatprep.subr.mxu0 0.0
    %1154 = vmatpush1.xpose.msra.mxu0 0.0
    %1155 = vmatprep.subr.mxu0 0.0
    %1156 = vmatpush1.xpose.msra.mxu0 0.0
    %1157 = vmatprep.subr.mxu0 0.0
    %1158 = vmatpush1.xpose.msra.mxu0 0.0
    %1159 = vmatprep.subr.mxu0 0.0
    %1160 = vmatpush1.xpose.msra.mxu0 0.0
    %1161 = vmatprep.subr.mxu0 0.0
    %1162 = vmatpush1.xpose.msra.mxu0 0.0
    %1163 = vmatprep.subr.mxu0 0.0
    %1164 = vmatpush1.xpose.msra.mxu0 0.0
    %1165 = vmatprep.subr.mxu0 0.0
    %1166 = vmatpush1.xpose.msra.mxu0 0.0
    %1167 = vmatprep.subr.mxu0 0.0
    %1168 = vmatpush1.xpose.msra.mxu0 0.0
    %1169 = vmatprep.subr.mxu0 0.0
    %1170 = vmatpush1.xpose.msra.mxu0 0.0
    %1171 = vmatprep.subr.mxu0 0.0
    %1172 = vmatpush1.xpose.msra.mxu0 0.0
    %1173 = vmatprep.subr.mxu0 0.0
    %1174 = vmatpush1.xpose.msra.mxu0 0.0
    %1175 = vmatprep.subr.mxu0 0.0
    %1176 = vmatpush1.xpose.msra.mxu0 0.0
    %1177 = vmatprep.subr.mxu0 0.0
    %1178 = vmatpush1.xpose.msra.mxu0 0.0
    %1179 = vmatprep.subr.mxu0 0.0
    %1180 = vmatpush1.xpose.msra.mxu0 0.0
    %1181 = vmatprep.subr.mxu0 0.0
    %1182 = vmatpush1.xpose.msra.mxu0 0.0
    %1183 = vmatprep.subr.mxu0 0.0
    %1184 = vmatpush1.xpose.msra.mxu0 0.0
    %1185 = vmatprep.subr.mxu0 0.0
    %1186 = vmatpush1.xpose.msra.mxu0 0.0
    %1187 = vmatprep.subr.mxu0 0.0
    %1188 = vmatpush1.xpose.msra.mxu0 0.0
    %1189 = vmatprep.subr.mxu0 0.0
    %1190 = vmatpush1.xpose.msra.mxu0 0.0
    %1191 = vmatprep.subr.mxu0 0.0
    %1192 = vmatpush1.xpose.msra.mxu0 0.0
    %1193 = vmatprep.subr.mxu0 0.0
    %1194 = vmatpush1.xpose.msra.mxu0 0.0
    %1195 = vmatprep.subr.mxu0 0.0
    %1196 = vmatpush1.xpose.msra.mxu0 0.0
    %1197 = vmatprep.subr.mxu0 0.0
    %1198 = vmatpush1.xpose.msra.mxu0 0.0
    %1199 = vmatprep.subr.mxu0 0.0
    %1200 = vmatpush1.xpose.msra.mxu0 0.0
    %1201 = vmatprep.subr.mxu0 0.0
    %1202 = vmatpush1.xpose.msra.mxu0 0.0
    %1203 = vmatprep.subr.mxu0 0.0
    %1204 = vmatpush1.xpose.msra.mxu0 0.0
    %1205 = vmatprep.subr.mxu0 0.0
    %1206 = vmatpush1.xpose.msra.mxu0 0.0
    %1207 = vmatprep.subr.mxu0 0.0
    %1208 = vmatpush1.xpose.msra.mxu0 0.0
    %1209 = vmatprep.mubr.f32.mxu0 0.0
    %1210 = vmatmul.mubr.f32.gmra.mrb[0].mxu0 %v1137
    %v1211 = vpop.f32.mrb[0].mxu0
    %v1212 = vadd.f32 0.0, %v1211
    %v1213 = vpop.f32.mrb[0].mxu0
    %1214 = vmatprep.mubr.f32.mxu0 0.0
    %1215 = vmatmul.mubr.f32.gmra.mrb[0].mxu0 %v1139
    %v1216 = vpop.f32.mrb[0].mxu0
    %v1217 = vadd.f32 0.0, %v1216
    %v1218 = vpop.f32.mrb[0].mxu0
    %1219 = vdwg.mxu0
    %v1220 = vmul.f32 %v1212, 0.35355338
    %v1221 = vmul.f32 %v1217, 0.35355338
    %v1222 = vadd.f32 %v1220, %v274
    %v1223 = vadd.f32 %v1221, %v275
    %v1224 = vsel %vm370, %v1222, -inf
    %1225 = vmax.xlane.f32.xlu0 %v1224
    %v1226 = vpop.xlane.xlu0 %1225
    %v1227 = vsel %vm370, %v1223, -inf
    %1228 = vmax.xlane.f32.xlu0 %v1227
    %v1229 = vpop.xlane.xlu0 %1228
    %v1230 = vsub.f32 %v1222, %v1226
    %v1231 = vsub.f32 %v1223, %v1229
    %v1232 = vmul.f32 %v1230, 1.442695
    %v1233 = vpow.pop %v1232
    %v1234 = vmul.f32 %v1231, 1.442695
    %v1235 = vpow.pop %v1234
    %v1236 = vsel %vm370, %v1233, 0.0
    %1237 = vadd.xlane.f32.xlu0 %v1236
    %v1238 = vpop.xlane.xlu0 %1237
    %v1239 = vsel %vm370, %v1235, 0.0
    %1240 = vadd.xlane.f32.xlu0 %v1239
    %v1241 = vpop.xlane.xlu0 %1240
    %v1242 = vrcp.pop %v1238
    %v1243 = vrcp.pop %v1241
    %v1244 = vmul.f32 %v1233, %v1242
    %v1245 = vmul.f32 %v1235, %v1243
    %1246 = vrot.lane.b32.xlu0 %v223, 104
    %v1247 = vpop.permute.xlu0 %1246
    %1248 = vrot.lane.b32.xlu0 %v228, 104
    %v1249 = vpop.permute.xlu0 %1248
    %v1253 = vsel %vm370, %v1244, 0
    %v1256 = vsel %vm370, %v1245, 0
    %1258 = vmatprep.subr.mxu0 0.0
    %1259 = vmatpush1.msra.mxu0 %v1247
    %1260 = vmatprep.subr.mxu0 0.0
    %1261 = vmatpush1.msra.mxu0 %v1249
    %1262 = vmatprep.subr.mxu0 0.0
    %1263 = vmatpush1.msra.mxu0 0.0
    %1264 = vmatprep.subr.mxu0 0.0
    %1265 = vmatpush1.msra.mxu0 0.0
    %1266 = vmatprep.subr.mxu0 0.0
    %1267 = vmatpush1.msra.mxu0 0.0
    %1268 = vmatprep.subr.mxu0 0.0
    %1269 = vmatpush1.msra.mxu0 0.0
    %1270 = vmatprep.subr.mxu0 0.0
    %1271 = vmatpush1.msra.mxu0 0.0
    %1272 = vmatprep.subr.mxu0 0.0
    %1273 = vmatpush1.msra.mxu0 0.0
    %1274 = vmatprep.subr.mxu0 0.0
    %1275 = vmatpush1.msra.mxu0 0.0
    %1276 = vmatprep.subr.mxu0 0.0
    %1277 = vmatpush1.msra.mxu0 0.0
    %1278 = vmatprep.subr.mxu0 0.0
    %1279 = vmatpush1.msra.mxu0 0.0
    %1280 = vmatprep.subr.mxu0 0.0
    %1281 = vmatpush1.msra.mxu0 0.0
    %1282 = vmatprep.subr.mxu0 0.0
    %1283 = vmatpush1.msra.mxu0 0.0
    %1284 = vmatprep.subr.mxu0 0.0
    %1285 = vmatpush1.msra.mxu0 0.0
    %1286 = vmatprep.subr.mxu0 0.0
    %1287 = vmatpush1.msra.mxu0 0.0
    %1288 = vmatprep.subr.mxu0 0.0
    %1289 = vmatpush1.msra.mxu0 0.0
    %1290 = vmatprep.subr.mxu0 0.0
    %1291 = vmatpush1.msra.mxu0 0.0
    %1292 = vmatprep.subr.mxu0 0.0
    %1293 = vmatpush1.msra.mxu0 0.0
    %1294 = vmatprep.subr.mxu0 0.0
    %1295 = vmatpush1.msra.mxu0 0.0
    %1296 = vmatprep.subr.mxu0 0.0
    %1297 = vmatpush1.msra.mxu0 0.0
    %1298 = vmatprep.subr.mxu0 0.0
    %1299 = vmatpush1.msra.mxu0 0.0
    %1300 = vmatprep.subr.mxu0 0.0
    %1301 = vmatpush1.msra.mxu0 0.0
    %1302 = vmatprep.subr.mxu0 0.0
    %1303 = vmatpush1.msra.mxu0 0.0
    %1304 = vmatprep.subr.mxu0 0.0
    %1305 = vmatpush1.msra.mxu0 0.0
    %1306 = vmatprep.subr.mxu0 0.0
    %1307 = vmatpush1.msra.mxu0 0.0
    %1308 = vmatprep.subr.mxu0 0.0
    %1309 = vmatpush1.msra.mxu0 0.0
    %1310 = vmatprep.subr.mxu0 0.0
    %1311 = vmatpush1.msra.mxu0 0.0
    %1312 = vmatprep.subr.mxu0 0.0
    %1313 = vmatpush1.msra.mxu0 0.0
    %1314 = vmatprep.subr.mxu0 0.0
    %1315 = vmatpush1.msra.mxu0 0.0
    %1316 = vmatprep.subr.mxu0 0.0
    %1317 = vmatpush1.msra.mxu0 0.0
    %1318 = vmatprep.subr.mxu0 0.0
    %1319 = vmatpush1.msra.mxu0 0.0
    %1320 = vmatprep.subr.mxu0 0.0
    %1321 = vmatpush1.msra.mxu0 0.0
    %1322 = vmatprep.mubr.f32.mxu0 0.0
    %1323 = vmatmul.mubr.f32.gmra.mrb[0].mxu0 %v1253
    %v1324 = vpop.f32.mrb[0].mxu0
    %v1325 = vadd.f32 0.0, %v1324
    %v1326 = vpop.f32.mrb[0].mxu0
    %1327 = vmatprep.mubr.f32.mxu0 0.0
    %1328 = vmatmul.mubr.f32.gmra.mrb[0].mxu0 %v1256
    %v1329 = vpop.f32.mrb[0].mxu0
    %v1330 = vadd.f32 0.0, %v1329
    %v1331 = vpop.f32.mrb[0].mxu0
    %1332 = vdwg.mxu0
    %v1334 = vsel %vm282, %v1325, 0
    %v1337 = vsel %vm282, %v1330, 0
    %1339 = vmatprep.subr.mxu0 0.0
    %1340 = vmatpush1.msra.mxu0 %v42
    %1341 = vmatprep.subr.mxu0 0.0
    %1342 = vmatpush1.msra.mxu0 0.0
    %1343 = vmatprep.subr.mxu0 0.0
    %1344 = vmatpush1.msra.mxu0 0.0
    %1345 = vmatprep.subr.mxu0 0.0
    %1346 = vmatpush1.msra.mxu0 0.0
    %1347 = vmatprep.subr.mxu0 0.0
    %1348 = vmatpush1.msra.mxu0 0.0
    %1349 = vmatprep.subr.mxu0 0.0
    %1350 = vmatpush1.msra.mxu0 0.0
    %1351 = vmatprep.subr.mxu0 0.0
    %1352 = vmatpush1.msra.mxu0 0.0
    %1353 = vmatprep.subr.mxu0 0.0
    %1354 = vmatpush1.msra.mxu0 0.0
    %1355 = vmatprep.subr.mxu0 0.0
    %1356 = vmatpush1.msra.mxu0 0.0
    %1357 = vmatprep.subr.mxu0 0.0
    %1358 = vmatpush1.msra.mxu0 0.0
    %1359 = vmatprep.subr.mxu0 0.0
    %1360 = vmatpush1.msra.mxu0 0.0
    %1361 = vmatprep.subr.mxu0 0.0
    %1362 = vmatpush1.msra.mxu0 0.0
    %1363 = vmatprep.subr.mxu0 0.0
    %1364 = vmatpush1.msra.mxu0 0.0
    %1365 = vmatprep.subr.mxu0 0.0
    %1366 = vmatpush1.msra.mxu0 0.0
    %1367 = vmatprep.subr.mxu0 0.0
    %1368 = vmatpush1.msra.mxu0 0.0
    %1369 = vmatprep.subr.mxu0 0.0
    %1370 = vmatpush1.msra.mxu0 0.0
    %1371 = vmatprep.subr.mxu0 0.0
    %1372 = vmatpush1.msra.mxu0 0.0
    %1373 = vmatprep.subr.mxu0 0.0
    %1374 = vmatpush1.msra.mxu0 0.0
    %1375 = vmatprep.subr.mxu0 0.0
    %1376 = vmatpush1.msra.mxu0 0.0
    %1377 = vmatprep.subr.mxu0 0.0
    %1378 = vmatpush1.msra.mxu0 0.0
    %1379 = vmatprep.subr.mxu0 0.0
    %1380 = vmatpush1.msra.mxu0 0.0
    %1381 = vmatprep.subr.mxu0 0.0
    %1382 = vmatpush1.msra.mxu0 0.0
    %1383 = vmatprep.subr.mxu0 0.0
    %1384 = vmatpush1.msra.mxu0 0.0
    %1385 = vmatprep.subr.mxu0 0.0
    %1386 = vmatpush1.msra.mxu0 0.0
    %1387 = vmatprep.subr.mxu0 0.0
    %1388 = vmatpush1.msra.mxu0 0.0
    %1389 = vmatprep.subr.mxu0 0.0
    %1390 = vmatpush1.msra.mxu0 0.0
    %1391 = vmatprep.subr.mxu0 0.0
    %1392 = vmatpush1.msra.mxu0 0.0
    %1393 = vmatprep.subr.mxu0 0.0
    %1394 = vmatpush1.msra.mxu0 0.0
    %1395 = vmatprep.subr.mxu0 0.0
    %1396 = vmatpush1.msra.mxu0 0.0
    %1397 = vmatprep.subr.mxu0 0.0
    %1398 = vmatpush1.msra.mxu0 0.0
    %1399 = vmatprep.subr.mxu0 0.0
    %1400 = vmatpush1.msra.mxu0 0.0
    %1401 = vmatprep.subr.mxu0 0.0
    %1402 = vmatpush1.msra.mxu0 0.0
    %1403 = vmatprep.mubr.f32.mxu0 0.0
    %1404 = vmatmul.mubr.f32.gmra.mrb[0].mxu0 %v1334
    %v1405 = vpop.f32.mrb[0].mxu0
    %v1406 = vadd.f32 0.0, %v1405
    %v1407 = vpop.f32.mrb[0].mxu0
    %1408 = vmatprep.mubr.f32.mxu0 0.0
    %1409 = vmatmul.mubr.f32.gmra.mrb[0].mxu0 %v1337
    %v1410 = vpop.f32.mrb[0].mxu0
    %v1411 = vadd.f32 0.0, %v1410
    %v1412 = vpop.f32.mrb[0].mxu0
    %1413 = vdwg.mxu0
    %v1414 = vadd.f32 %v1127, %v1406
    %v1415 = vadd.f32 %v1128, %v1411
    %v1416 = vlaneseq
    %v1417 = vshrl.u32 %v1416, 7
    %v1418 = vsub.s32 0, %v1417
    %v1419 = vrot.slane %v53, %v1418
    %v1420 = vadd.f32 %v1414, %v1419
    %v1421 = vadd.f32 %v1415, %v1419
    %v1422 = vadd.f32 %v21, %v1420
    %v1423 = vadd.f32 %v22, %v1421
    %v1424 = vsel %vm64, %v1422, 0.0
    %1425 = vadd.xlane.f32.xlu0 %v1424
    %v1426 = vpop.xlane.xlu0 %1425
    %v1427 = vsel %vm64, %v1423, 0.0
    %1428 = vadd.xlane.f32.xlu0 %v1427
    %v1429 = vpop.xlane.xlu0 %1428
    %v1430 = vrcp.pop 32.0
    %v1431 = vmul.f32 %v1426, %v1430
    %v1432 = vmul.f32 %v1429, %v1430
    %v1433 = vsub.f32 %v1422, %v1431
    %v1434 = vsub.f32 %v1423, %v1432
    %v1435 = vmul.f32 %v1433, %v1433
    %v1436 = vmul.f32 %v1434, %v1434
    %v1437 = vsel %vm64, %v1435, 0.0
    %1438 = vadd.xlane.f32.xlu0 %v1437
    %v1439 = vpop.xlane.xlu0 %1438
    %v1440 = vsel %vm64, %v1436, 0.0
    %1441 = vadd.xlane.f32.xlu0 %v1440
    %v1442 = vpop.xlane.xlu0 %1441
    %v1443 = vmul.f32 %v1439, %v1430
    %v1444 = vmul.f32 %v1442, %v1430
    %v1445 = vadd.f32 %v1443, 1e-05
    %v1446 = vadd.f32 %v1444, 1e-05
    %v1447 = vrsqrt.pop %v1445
    %v1448 = vrsqrt.pop %v1446
    %v1449 = vmul.f32 %v1433, %v1447
    %v1450 = vmul.f32 %v1434, %v1448
    %v1451 = vlaneseq
    %v1452 = vshrl.u32 %v1451, 7
    %v1453 = vsub.s32 0, %v1452
    %v1454 = vrot.slane %v56, %v1453
    %v1455 = vmul.f32 %v1449, %v1454
    %v1456 = vmul.f32 %v1450, %v1454
    %v1457 = vlaneseq
    %v1458 = vshrl.u32 %v1457, 7
    %v1459 = vsub.s32 0, %v1458
    %v1460 = vrot.slane %v57, %v1459
    %v1461 = vadd.f32 %v1455, %v1460
    %v1462 = vadd.f32 %v1456, %v1460
    %v1463 = vlaneseq
    %v1464 = vshrl.u32 %v1463, 7
    %v1465 = vsub.s32 0, %v1464
    %v1466 = vrot.slane %v54, %v1465
    %v1468 = vsel %vm64, %v1461, 0
    %v1471 = vsel %vm64, %v1462, 0
    %1473 = vmatprep.subr.mxu0 0.0
    %1474 = vmatpush1.msra.mxu0 %v31
    %1475 = vmatprep.subr.mxu0 0.0
    %1476 = vmatpush1.msra.mxu0 %v32
    %1477 = vmatprep.subr.mxu0 0.0
    %1478 = vmatpush1.msra.mxu0 %v33
    %1479 = vmatprep.subr.mxu0 0.0
    %1480 = vmatpush1.msra.mxu0 %v34
    %1481 = vmatprep.subr.mxu0 0.0
    %1482 = vmatpush1.msra.mxu0 0.0
    %1483 = vmatprep.subr.mxu0 0.0
    %1484 = vmatpush1.msra.mxu0 0.0
    %1485 = vmatprep.subr.mxu0 0.0
    %1486 = vmatpush1.msra.mxu0 0.0
    %1487 = vmatprep.subr.mxu0 0.0
    %1488 = vmatpush1.msra.mxu0 0.0
    %1489 = vmatprep.subr.mxu0 0.0
    %1490 = vmatpush1.msra.mxu0 0.0
    %1491 = vmatprep.subr.mxu0 0.0
    %1492 = vmatpush1.msra.mxu0 0.0
    %1493 = vmatprep.subr.mxu0 0.0
    %1494 = vmatpush1.msra.mxu0 0.0
    %1495 = vmatprep.subr.mxu0 0.0
    %1496 = vmatpush1.msra.mxu0 0.0
    %1497 = vmatprep.subr.mxu0 0.0
    %1498 = vmatpush1.msra.mxu0 0.0
    %1499 = vmatprep.subr.mxu0 0.0
    %1500 = vmatpush1.msra.mxu0 0.0
    %1501 = vmatprep.subr.mxu0 0.0
    %1502 = vmatpush1.msra.mxu0 0.0
    %1503 = vmatprep.subr.mxu0 0.0
    %1504 = vmatpush1.msra.mxu0 0.0
    %1505 = vmatprep.subr.mxu0 0.0
    %1506 = vmatpush1.msra.mxu0 0.0
    %1507 = vmatprep.subr.mxu0 0.0
    %1508 = vmatpush1.msra.mxu0 0.0
    %1509 = vmatprep.subr.mxu0 0.0
    %1510 = vmatpush1.msra.mxu0 0.0
    %1511 = vmatprep.subr.mxu0 0.0
    %1512 = vmatpush1.msra.mxu0 0.0
    %1513 = vmatprep.subr.mxu0 0.0
    %1514 = vmatpush1.msra.mxu0 0.0
    %1515 = vmatprep.subr.mxu0 0.0
    %1516 = vmatpush1.msra.mxu0 0.0
    %1517 = vmatprep.subr.mxu0 0.0
    %1518 = vmatpush1.msra.mxu0 0.0
    %1519 = vmatprep.subr.mxu0 0.0
    %1520 = vmatpush1.msra.mxu0 0.0
    %1521 = vmatprep.subr.mxu0 0.0
    %1522 = vmatpush1.msra.mxu0 0.0
    %1523 = vmatprep.subr.mxu0 0.0
    %1524 = vmatpush1.msra.mxu0 0.0
    %1525 = vmatprep.subr.mxu0 0.0
    %1526 = vmatpush1.msra.mxu0 0.0
    %1527 = vmatprep.subr.mxu0 0.0
    %1528 = vmatpush1.msra.mxu0 0.0
    %1529 = vmatprep.subr.mxu0 0.0
    %1530 = vmatpush1.msra.mxu0 0.0
    %1531 = vmatprep.subr.mxu0 0.0
    %1532 = vmatpush1.msra.mxu0 0.0
    %1533 = vmatprep.subr.mxu0 0.0
    %1534 = vmatpush1.msra.mxu0 0.0
    %1535 = vmatprep.subr.mxu0 0.0
    %1536 = vmatpush1.msra.mxu0 0.0
    %1537 = vmatprep.mubr.f32.mxu0 0.0
    %1538 = vmatmul.mubr.f32.gmra.mrb[0].mxu0 %v1468
    %v1539 = vpop.f32.mrb[0].mxu0
    %v1540 = vadd.f32 %v1466, %v1539
    %v1541 = vpop.f32.mrb[0].mxu0
    %1542 = vmatprep.mubr.f32.mxu0 0.0
    %1543 = vmatmul.mubr.f32.gmra.mrb[0].mxu0 %v1471
    %v1544 = vpop.f32.mrb[0].mxu0
    %v1545 = vadd.f32 %v1466, %v1544
    %v1546 = vpop.f32.mrb[0].mxu0
    %1547 = vdwg.mxu0
    %v1548 = vmax.f32 %v1540, 0.0
    %v1549 = vmax.f32 %v1545, 0.0
    %v1550 = vlaneseq
    %v1551 = vshrl.u32 %v1550, 7
    %v1552 = vsub.s32 0, %v1551
    %v1553 = vrot.slane %v55, %v1552
    %vm1554 = vcmask 523264
    %v1556 = vsel %vm1554, %v1548, 0
    %v1559 = vsel %vm1554, %v1549, 0
    %1561 = vmatprep.subr.mxu0 0.0
    %1562 = vmatpush1.msra.mxu0 %v43
    %1563 = vmatprep.subr.mxu0 0.0
    %1564 = vmatpush1.msra.mxu0 %v44
    %1565 = vmatprep.subr.mxu0 0.0
    %1566 = vmatpush1.msra.mxu0 %v45
    %1567 = vmatprep.subr.mxu0 0.0
    %1568 = vmatpush1.msra.mxu0 %v46
    %1569 = vmatprep.subr.mxu0 0.0
    %1570 = vmatpush1.msra.mxu0 %v47
    %1571 = vmatprep.subr.mxu0 0.0
    %1572 = vmatpush1.msra.mxu0 %v48
    %1573 = vmatprep.subr.mxu0 0.0
    %1574 = vmatpush1.msra.mxu0 %v49
    %1575 = vmatprep.subr.mxu0 0.0
    %1576 = vmatpush1.msra.mxu0 %v50
    %1577 = vmatprep.subr.mxu0 0.0
    %1578 = vmatpush1.msra.mxu0 0.0
    %1579 = vmatprep.subr.mxu0 0.0
    %1580 = vmatpush1.msra.mxu0 0.0
    %1581 = vmatprep.subr.mxu0 0.0
    %1582 = vmatpush1.msra.mxu0 0.0
    %1583 = vmatprep.subr.mxu0 0.0
    %1584 = vmatpush1.msra.mxu0 0.0
    %1585 = vmatprep.subr.mxu0 0.0
    %1586 = vmatpush1.msra.mxu0 0.0
    %1587 = vmatprep.subr.mxu0 0.0
    %1588 = vmatpush1.msra.mxu0 0.0
    %1589 = vmatprep.subr.mxu0 0.0
    %1590 = vmatpush1.msra.mxu0 0.0
    %1591 = vmatprep.subr.mxu0 0.0
    %1592 = vmatpush1.msra.mxu0 0.0
    %1593 = vmatprep.subr.mxu0 0.0
    %1594 = vmatpush1.msra.mxu0 0.0
    %1595 = vmatprep.subr.mxu0 0.0
    %1596 = vmatpush1.msra.mxu0 0.0
    %1597 = vmatprep.subr.mxu0 0.0
    %1598 = vmatpush1.msra.mxu0 0.0
    %1599 = vmatprep.subr.mxu0 0.0
    %1600 = vmatpush1.msra.mxu0 0.0
    %1601 = vmatprep.subr.mxu0 0.0
    %1602 = vmatpush1.msra.mxu0 0.0
    %1603 = vmatprep.subr.mxu0 0.0
    %1604 = vmatpush1.msra.mxu0 0.0
    %1605 = vmatprep.subr.mxu0 0.0
    %1606 = vmatpush1.msra.mxu0 0.0
    %1607 = vmatprep.subr.mxu0 0.0
    %1608 = vmatpush1.msra.mxu0 0.0
    %1609 = vmatprep.subr.mxu0 0.0
    %1610 = vmatpush1.msra.mxu0 0.0
    %1611 = vmatprep.subr.mxu0 0.0
    %1612 = vmatpush1.msra.mxu0 0.0
    %1613 = vmatprep.subr.mxu0 0.0
    %1614 = vmatpush1.msra.mxu0 0.0
    %1615 = vmatprep.subr.mxu0 0.0
    %1616 = vmatpush1.msra.mxu0 0.0
    %1617 = vmatprep.subr.mxu0 0.0
    %1618 = vmatpush1.msra.mxu0 0.0
    %1619 = vmatprep.subr.mxu0 0.0
    %1620 = vmatpush1.msra.mxu0 0.0
    %1621 = vmatprep.subr.mxu0 0.0
    %1622 = vmatpush1.msra.mxu0 0.0
    %1623 = vmatprep.subr.mxu0 0.0
    %1624 = vmatpush1.msra.mxu0 0.0
    %1625 = vmatprep.mubr.f32.mxu0 0.0
    %1626 = vmatmul.mubr.f32.gmra.mrb[0].mxu0 %v1556
    %v1627 = vpop.f32.mrb[0].mxu0
    %v1628 = vadd.f32 %v1553, %v1627
    %v1629 = vpop.f32.mrb[0].mxu0
    %1630 = vmatprep.mubr.f32.mxu0 0.0
    %1631 = vmatmul.mubr.f32.gmra.mrb[0].mxu0 %v1559
    %v1632 = vpop.f32.mrb[0].mxu0
    %v1633 = vadd.f32 %v1553, %v1632
    %v1634 = vpop.f32.mrb[0].mxu0
    %1635 = vdwg.mxu0
    %v1636 = vadd.f32 %v1461, %v1628
    %v1637 = vadd.f32 %v1462, %v1633
    %v1638 = vsel %vm64, %v1636, 0.0
    %1639 = vadd.xlane.f32.xlu0 %v1638
    %v1640 = vpop.xlane.xlu0 %1639
    %v1641 = vsel %vm64, %v1637, 0.0
    %1642 = vadd.xlane.f32.xlu0 %v1641
    %v1643 = vpop.xlane.xlu0 %1642
    %v1644 = vmul.f32 %v1640, %v1430
    %v1645 = vmul.f32 %v1643, %v1430
    %v1646 = vsub.f32 %v1636, %v1644
    %v1647 = vsub.f32 %v1637, %v1645
    %v1648 = vmul.f32 %v1646, %v1646
    %v1649 = vmul.f32 %v1647, %v1647
    %v1650 = vsel %vm64, %v1648, 0.0
    %1651 = vadd.xlane.f32.xlu0 %v1650
    %v1652 = vpop.xlane.xlu0 %1651
    %v1653 = vsel %vm64, %v1649, 0.0
    %1654 = vadd.xlane.f32.xlu0 %v1653
    %v1655 = vpop.xlane.xlu0 %1654
    %v1656 = vmul.f32 %v1652, %v1430
    %v1657 = vmul.f32 %v1655, %v1430
    %v1658 = vadd.f32 %v1656, 1e-05
    %v1659 = vadd.f32 %v1657, 1e-05
    %v1660 = vrsqrt.pop %v1658
    %v1661 = vrsqrt.pop %v1659
    %v1662 = vmul.f32 %v1646, %v1660
    %v1663 = vmul.f32 %v1647, %v1661
    %v1664 = vlaneseq
    %v1665 = vshrl.u32 %v1664, 7
    %v1666 = vsub.s32 0, %v1665
    %v1667 = vrot.slane %v58, %v1666
    %v1668 = vmul.f32 %v1662, %v1667
    %v1669 = vmul.f32 %v1663, %v1667
    %v1670 = vlaneseq
    %v1671 = vshrl.u32 %v1670, 7
    %v1672 = vsub.s32 0, %v1671
    %v1673 = vrot.slane %v59, %v1672
    %v1674 = vadd.f32 %v1668, %v1673
    %v1675 = vadd.f32 %v1669, %v1673
    %1676 = vst.msk [vmem:[#allocation2] sm:$0xff] %vm64, %v1674
    %1677 = vst.msk [vmem:[#allocation2 + $0x8] sm:$0xff] %vm64, %v1675
    // Predicated region
    $region22: #{transformer_encoder_layer.1} parent=1 // pred_check
      _
    $region23: #{transformer_encoder_layer.1} parent=1 // pred_check_branch
      %1679 = sbr.rel (0) target = $region25
    $region24: #{transformer_encoder_layer.1} parent=1 // pred_region
      %s1681 = ssub.s32 256, 256
      %1682 = vsyncadd [#allocation3], %s1681
      %s1683 = sshll.u32 [#allocation2], 4
      %s1684 = int_to_ptr.vmem [resolvable:$true] %s1683
      %1689 = dma.vmem_to_hbm [thread:$0]  %s1684, 256, %s5, [#allocation3], 128, 128, 8
    $region25: #{transformer_encoder_layer.1} parent=1 // pred_fallthru
      _
    // Predicated region
    $region26: #{transformer_encoder_layer.1} parent=1 // pred_check
      _
    $region27: #{transformer_encoder_layer.1} parent=1 // pred_check_branch
      %1691 = sbr.rel (0) target = $region29
    $region28: #{transformer_encoder_layer.1} parent=1 // pred_region
      %1692 = dma.done [#allocation3], 256
    $region29: #{transformer_encoder_layer.1} parent=1 // pred_fallthru
      _
    %1693 = vsyncpa [#allocation3], 1

</llo_original>
